<compile_context>
chip_gen: v7x
topology: tpu7x:2x2x1
jax: 0.10.0
libtpu: 0.0.40
codegen_flags: <defaults>
</compile_context>

<pallas_src>
import functools

import jax
import jax.numpy as jnp
import numpy as np
from jax.experimental import pallas as pl
from jax.experimental.pallas import tpu as pltpu


# ----------------------------- Pallas kernels ---------------------------------


def _matmul_bias_kernel(x_ref, w_ref, bias_ref, out_ref, *, relu):
    """out = x @ w + bias (+ReLU).  x:(TM,K) bf16  w:(K,TC) bf16  bias:(1,TC) f32."""
    acc = jnp.dot(x_ref[...], w_ref[...], preferred_element_type=jnp.float32)
    y = acc + bias_ref[...]
    if relu:
        y = jnp.maximum(y, 0.0)
    out_ref[...] = y.astype(out_ref.dtype)


def _matmul_bias_add_relu_kernel(x_ref, w_ref, bias_ref, res_ref, out_ref):
    """out = relu(x @ w + bias + res)  -- second conv of the block, fused residual."""
    acc = jnp.dot(x_ref[...], w_ref[...], preferred_element_type=jnp.float32)
    y = acc + bias_ref[...] + res_ref[...].astype(jnp.float32)
    out_ref[...] = jnp.maximum(y, 0.0).astype(out_ref.dtype)


# ----------------------------- tiling helpers ----------------------------------


def _round_up(x, m):
    return (x + m - 1) // m * m


def _tpu_kind():
    try:
        return jax.devices()[0].device_kind.lower()
    except Exception:
        return ""


def _vmem_budget_bytes():
    kind = _tpu_kind()
    if "v5" in kind or "v6" in kind:
        return 96 * 1024 * 1024          # 128 MiB physical VMEM parts
    return 48 * 1024 * 1024              # v7x (64 MiB) and unknown: conservative


def _tm_target():
    return 512 if "v7" in _tpu_kind() else 1024


def _fused_matmul(x2d, w2d, bias, res2d, relu, out_dtype):
    """Tiled (M,K)@(K,Coutp) + bias (+res) (+ReLU) Pallas call.  Coutp is a multiple of 128."""
    M, K = x2d.shape
    _, Coutp = w2d.shape
    budget = _vmem_budget_bytes()
    out_itemsize = np.dtype(out_dtype).itemsize

    # Row tile: budget-derived, 16-aligned (bf16 sublane pack); keep >=2 M tiles for megacore.
    tm = min(_tm_target(), _round_up(M, 16))
    if tm >= M and M > 16:
        tm = _round_up((M + 1) // 2, 16)

    # Weight tile: keep the whole folded weight resident in VMEM when it is only a few MiB
    # (all ResNet-sized layers); otherwise fall back to 128/256-lane Cout tiles.
    if K * Coutp * 2 <= 8 * 1024 * 1024:
        tc = Coutp
    else:
        tc = 256 if Coutp % 256 == 0 else 128

    def vmem_bytes(tm_):
        b = 2 * tm_ * K * x2d.dtype.itemsize              # double-buffered activation tiles
        b += 2 * K * tc * w2d.dtype.itemsize              # weight tile(s)
        b += 2 * tm_ * tc * out_itemsize                  # output tiles
        b += 2 * tm_ * tc * 4                             # f32 accumulator headroom
        if res2d is not None:
            b += 2 * tm_ * tc * res2d.dtype.itemsize      # residual tiles
        return b

    while tm > 16 and vmem_bytes(tm) > int(0.6 * budget):
        tm = _round_up(tm // 2, 16)

    Mp = _round_up(M, tm)
    if Mp != M:
        x2d = jnp.pad(x2d, ((0, Mp - M), (0, 0)))
        if res2d is not None:
            res2d = jnp.pad(res2d, ((0, Mp - M), (0, 0)))
    grid = (Mp // tm, Coutp // tc)

    bias2d = bias.reshape(1, Coutp).astype(jnp.float32)

    in_specs = [
        pl.BlockSpec((tm, K), lambda i, j: (i, 0)),       # bf16 activations / patches
        pl.BlockSpec((K, tc), lambda i, j: (0, j)),       # bf16 BN-folded weights (resident if tc==Coutp)
        pl.BlockSpec((1, tc), lambda i, j: (0, j)),       # f32 folded BN bias
    ]
    args = [x2d, w2d, bias2d]

    if res2d is not None:
        in_specs.append(pl.BlockSpec((tm, tc), lambda i, j: (i, j)))
        args.append(res2d)
        kernel = _matmul_bias_add_relu_kernel
    else:
        kernel = functools.partial(_matmul_bias_kernel, relu=relu)

    flops = 2 * Mp * K * Coutp
    bytes_accessed = (
        x2d.size * x2d.dtype.itemsize
        + w2d.size * w2d.dtype.itemsize
        + bias2d.size * 4
        + (0 if res2d is None else res2d.size * res2d.dtype.itemsize)
        + Mp * Coutp * out_itemsize
    )

    out = pl.pallas_call(
        kernel,
        out_shape=jax.ShapeDtypeStruct((Mp, Coutp), out_dtype),
        grid=grid,
        in_specs=in_specs,
        out_specs=pl.BlockSpec((tm, tc), lambda i, j: (i, j)),
        compiler_params=pltpu.CompilerParams(
            dimension_semantics=("parallel", "parallel"),
            vmem_limit_bytes=budget,
        ),
        cost_estimate=pl.CostEstimate(
            flops=flops, transcendentals=0, bytes_accessed=bytes_accessed),
    )(*args)

    return out[:M] if Mp != M else out


# ----------------------------- conv wrappers ------------------------------------


def _im2col(xpad, KH, KW, Ho, Wo, stride):
    """Strided patch extraction (XLA side).  Feature order = (kh, kw, cin)."""
    cols = []
    for kh in range(KH):
        for kw in range(KW):
            cols.append(
                xpad[:, kh:kh + (Ho - 1) * stride + 1:stride,
                        kw:kw + (Wo - 1) * stride + 1:stride, :])
    return jnp.concatenate(cols, axis=-1)  # (N, Ho, Wo, KH*KW*Cin)


def conv_bn(x_nhwc, w_hwio, scale, bias, *, stride, padding, relu,
            residual=None, out_dtype=jnp.float32):
    """Conv (any stride) + folded BN (+ residual) (+ ReLU) as one tiled Pallas matmul."""
    N, H, W, Cin = x_nhwc.shape
    KH, KW, _, Cout = w_hwio.shape
    Ho = (H + 2 * padding - KH) // stride + 1
    Wo = (W + 2 * padding - KW) // stride + 1
    M = N * Ho * Wo
    K = KH * KW * Cin

    # Fold BN scale into the conv weights in f32, then cast operands to bf16 (MXU-native).
    w_folded = (w_hwio.astype(jnp.float32) * scale[None, None, None, :]).reshape(K, Cout)

    # Pad Cout to a multiple of 128 -> lane-dense stores and a full MXU N dimension.
    Coutp = _round_up(Cout, 128)
    bias_p = bias.astype(jnp.float32)
    if Coutp != Cout:
        w_folded = jnp.pad(w_folded, ((0, 0), (0, Coutp - Cout)))
        bias_p = jnp.pad(bias_p, (0, Coutp - Cout))
    w_folded = w_folded.astype(jnp.bfloat16)

    if KH == 1 and KW == 1 and padding == 0:
        patches = x_nhwc[:, ::stride, ::stride, :]           # 1x1 conv: plain subsample
    else:
        xpad = jnp.pad(x_nhwc, ((0, 0), (padding, padding), (padding, padding), (0, 0)))
        patches = _im2col(xpad, KH, KW, Ho, Wo, stride)
    x2d = patches.reshape(M, K).astype(jnp.bfloat16)

    res2d = None
    if residual is not None:
        res2d = residual.reshape(M, Cout)
        if Coutp != Cout:
            res2d = jnp.pad(res2d, ((0, 0), (0, Coutp - Cout)))
        res2d = res2d.astype(jnp.bfloat16)

    out2d = _fused_matmul(x2d, w_folded, bias_p, res2d, relu, out_dtype)
    if Coutp != Cout:
        out2d = out2d[:, :Cout]
    return out2d.reshape(N, Ho, Wo, Cout)


# ----------------------------- BasicBlockEnc forward ---------------------------


def basic_block_enc(x_nchw, params, stride):
    """Forward pass of BasicBlockEnc. Input/output are NCHW (PyTorch convention)."""
    # TODO(synk): in a full encoder these NCHW<->NHWC transposes should be hoisted so the
    #             whole network stays NHWC (channels on the lane dim) end-to-end.
    x = jnp.transpose(x_nchw, (0, 2, 3, 1))  # -> NHWC
    final_dtype = x_nchw.dtype

    # conv1 (3x3, stride s) + bn1 + relu -- strided output computed directly, bf16 intermediate.
    out = conv_bn(x, params["w1"], params["scale1"], params["bias1"],
                  stride=stride, padding=1, relu=True, out_dtype=jnp.bfloat16)

    # shortcut
    if stride == 1:
        sc = x
    else:
        sc = conv_bn(x, params["w_sc"], params["scale_sc"], params["bias_sc"],
                     stride=stride, padding=0, relu=False, out_dtype=jnp.bfloat16)

    # conv2 (3x3, stride 1) + bn2 + residual add + relu, fully fused in one kernel.
    out = conv_bn(out, params["w2"], params["scale2"], params["bias2"],
                  stride=1, padding=1, relu=True, residual=sc, out_dtype=final_dtype)

    return jnp.transpose(out, (0, 3, 1, 2))  # -> NCHW


# ----------------------------- parameters & reference --------------------------


def _fold_bn(gamma, beta, mean, var, eps=1e-5):
    scale = gamma / jnp.sqrt(var + eps)
    return scale, beta - mean * scale


def init_params(key, in_planes, stride):
    planes = in_planes * stride
    keys = jax.random.split(key, 6)

    def conv_w(k, kh, kw, cin, cout):
        bound = 1.0 / np.sqrt(cin * kh * kw)
        return jax.random.uniform(k, (kh, kw, cin, cout), jnp.float32, -bound, bound)

    def bn(k, c):
        k1, k2, k3, k4 = jax.random.split(k, 4)
        gamma = jax.random.uniform(k1, (c,), jnp.float32, 0.5, 1.5)
        beta = 0.1 * jax.random.normal(k2, (c,), jnp.float32)
        mean = 0.1 * jax.random.normal(k3, (c,), jnp.float32)
        var = jax.random.uniform(k4, (c,), jnp.float32, 0.5, 1.5)
        return _fold_bn(gamma, beta, mean, var)

    p = {}
    p["w1"] = conv_w(keys[0], 3, 3, in_planes, planes)
    p["scale1"], p["bias1"] = bn(keys[1], planes)
    p["w2"] = conv_w(keys[2], 3, 3, planes, planes)
    p["scale2"], p["bias2"] = bn(keys[3], planes)
    if stride != 1:
        p["w_sc"] = conv_w(keys[4], 1, 1, in_planes, planes)
        p["scale_sc"], p["bias_sc"] = bn(keys[5], planes)
    return p


def reference(x_nchw, params, stride):
    """Pure-JAX f32 reference (lax conv) mirroring the PyTorch forward (eval-mode BN)."""
    x = jnp.transpose(x_nchw, (0, 2, 3, 1))

    def conv(v, w, s, pad):
        return jax.lax.conv_general_dilated(
            v, w, (s, s), [(pad, pad), (pad, pad)],
            dimension_numbers=("NHWC", "HWIO", "NHWC"))

    out = conv(x, params["w1"], stride, 1) * params["scale1"] + params["bias1"]
    out = jnp.maximum(out, 0.0)
    out = conv(out, params["w2"], 1, 1) * params["scale2"] + params["bias2"]
    if stride == 1:
        sc = x
    else:
        sc = conv(x, params["w_sc"], stride, 0) * params["scale_sc"] + params["bias_sc"]
    out = jnp.maximum(out + sc, 0.0)
    return jnp.transpose(out, (0, 3, 1, 2))


# ----------------------------- main ---------------------------------------------

if __name__ == "__main__":
    N, C, H, W = 2, 4, 16, 16
    x = jax.random.normal(jax.random.PRNGKey(0), (N, C, H, W), jnp.float32)

    fwd = jax.jit(basic_block_enc, static_argnums=2)

    for stride in (1, 2):
        params = init_params(jax.random.PRNGKey(1 + stride), C, stride)
        out = jax.block_until_ready(fwd(x, params, stride))
        ref = jax.block_until_ready(reference(x, params, stride))
        assert out.shape == (N, C * stride, H // stride, W // stride), out.shape
        # bf16 operands / bf16 intermediate -> loosened tolerance vs the f32 reference.
        np.testing.assert_allclose(np.asarray(out), np.asarray(ref), rtol=2e-2, atol=5e-2)

    print("KERNEL_OK")
</pallas_src>

<mosaic_0001>
module attributes {stable_mosaic.version = 11 : i64} {
  func.func @_matmul_bias_kernel(%arg0: i32, %arg1: i32, %arg2: memref<256x36xbf16, #tpu.memory_space<vmem>>, %arg3: memref<36x128xbf16, #tpu.memory_space<vmem>>, %arg4: memref<1x128xf32, #tpu.memory_space<vmem>>, %arg5: memref<256x128xbf16, #tpu.memory_space<vmem>>) attributes {dimension_semantics = [#tpu.dimension_semantics<parallel>, #tpu.dimension_semantics<parallel>], iteration_bounds = array<i64: 2, 1>, scalar_prefetch = 0 : i64, scratch_operands = 0 : i64, tpu.core_type = #tpu.core_type<tc>, window_params = [{transform_indices = @transform_0, window_bounds = array<i64: 256, 36>}, {transform_indices = @transform_1, window_bounds = array<i64: 36, 128>}, {transform_indices = @transform_2, window_bounds = array<i64: 1, 128>}, {transform_indices = @transform_3, window_bounds = array<i64: 256, 128>}]} {
    %c0 = arith.constant 0 : index
    %c0_0 = arith.constant 0 : index
    %0 = vector.load %arg2[%c0, %c0_0] : memref<256x36xbf16, #tpu.memory_space<vmem>>, vector<256x36xbf16>
    %c0_1 = arith.constant 0 : index
    %c0_2 = arith.constant 0 : index
    %1 = vector.load %arg3[%c0_1, %c0_2] : memref<36x128xbf16, #tpu.memory_space<vmem>>, vector<36x128xbf16>
    %cst = arith.constant dense<0.000000e+00> : vector<256x128xf32>
    %2 = tpu.matmul %0, %1, %cst {dimension_numbers = #tpu.dot_dimension_numbers<[1], [0], [0], [1], [0, 0, 1, 1], [], []>} : vector<256x36xbf16>, vector<36x128xbf16>, vector<256x128xf32> -> vector<256x128xf32>
    %c0_3 = arith.constant 0 : index
    %c0_4 = arith.constant 0 : index
    %3 = vector.load %arg4[%c0_3, %c0_4] : memref<1x128xf32, #tpu.memory_space<vmem>>, vector<1x128xf32>
    %4 = vector.broadcast %3 : vector<1x128xf32> to vector<256x128xf32>
    %5 = arith.addf %2, %4 : vector<256x128xf32>
    %cst_5 = arith.constant 0.000000e+00 : f32
    %6 = vector.broadcast %cst_5 : f32 to vector<256x128xf32>
    %7 = arith.maximumf %5, %6 : vector<256x128xf32>
    %8 = arith.truncf %7 : vector<256x128xf32> to vector<256x128xbf16>
    %c0_6 = arith.constant 0 : index
    %c0_7 = arith.constant 0 : index
    %9 = vector.load %arg5[%c0_6, %c0_7] : memref<256x128xbf16, #tpu.memory_space<vmem>>, vector<256x128xbf16>
    tpu.vector_store %arg5[%c0_6, %c0_7], %8 {strides = array<i32>} : memref<256x128xbf16, #tpu.memory_space<vmem>>, vector<256x128xbf16>,
    return
  }
  func.func @transform_0(%arg0: i32, %arg1: i32) -> (i32, i32) {
    %c0_i32 = arith.constant 0 : i32
    %c0_i32_0 = arith.constant 0 : i32
    return %arg0, %c0_i32 : i32, i32
  }
  func.func @transform_1(%arg0: i32, %arg1: i32) -> (i32, i32) {
    %c0_i32 = arith.constant 0 : i32
    %c0_i32_0 = arith.constant 0 : i32
    return %c0_i32, %arg1 : i32, i32
  }
  func.func @transform_2(%arg0: i32, %arg1: i32) -> (i32, i32) {
    %c0_i32 = arith.constant 0 : i32
    %c0_i32_0 = arith.constant 0 : i32
    return %c0_i32, %arg1 : i32, i32
  }
  func.func @transform_3(%arg0: i32, %arg1: i32) -> (i32, i32) {
    %c0_i32 = arith.constant 0 : i32
    return %arg0, %arg1 : i32, i32
  }
}

module attributes {stable_mosaic.version = 11 : i64} {
  func.func @_matmul_bias_add_relu_kernel(%arg0: i32, %arg1: i32, %arg2: memref<256x36xbf16, #tpu.memory_space<vmem>>, %arg3: memref<36x128xbf16, #tpu.memory_space<vmem>>, %arg4: memref<1x128xf32, #tpu.memory_space<vmem>>, %arg5: memref<256x128xbf16, #tpu.memory_space<vmem>>, %arg6: memref<256x128xf32, #tpu.memory_space<vmem>>) attributes {dimension_semantics = [#tpu.dimension_semantics<parallel>, #tpu.dimension_semantics<parallel>], iteration_bounds = array<i64: 2, 1>, scalar_prefetch = 0 : i64, scratch_operands = 0 : i64, tpu.core_type = #tpu.core_type<tc>, window_params = [{transform_indices = @transform_0, window_bounds = array<i64: 256, 36>}, {transform_indices = @transform_1, window_bounds = array<i64: 36, 128>}, {transform_indices = @transform_2, window_bounds = array<i64: 1, 128>}, {transform_indices = @transform_3, window_bounds = array<i64: 256, 128>}, {transform_indices = @transform_4, window_bounds = array<i64: 256, 128>}]} {
    %c0 = arith.constant 0 : index
    %c0_0 = arith.constant 0 : index
    %0 = vector.load %arg2[%c0, %c0_0] : memref<256x36xbf16, #tpu.memory_space<vmem>>, vector<256x36xbf16>
    %c0_1 = arith.constant 0 : index
    %c0_2 = arith.constant 0 : index
    %1 = vector.load %arg3[%c0_1, %c0_2] : memref<36x128xbf16, #tpu.memory_space<vmem>>, vector<36x128xbf16>
    %cst = arith.constant dense<0.000000e+00> : vector<256x128xf32>
    %2 = tpu.matmul %0, %1, %cst {dimension_numbers = #tpu.dot_dimension_numbers<[1], [0], [0], [1], [0, 0, 1, 1], [], []>} : vector<256x36xbf16>, vector<36x128xbf16>, vector<256x128xf32> -> vector<256x128xf32>
    %c0_3 = arith.constant 0 : index
    %c0_4 = arith.constant 0 : index
    %3 = vector.load %arg4[%c0_3, %c0_4] : memref<1x128xf32, #tpu.memory_space<vmem>>, vector<1x128xf32>
    %4 = vector.broadcast %3 : vector<1x128xf32> to vector<256x128xf32>
    %5 = arith.addf %2, %4 : vector<256x128xf32>
    %c0_5 = arith.constant 0 : index
    %c0_6 = arith.constant 0 : index
    %6 = vector.load %arg5[%c0_5, %c0_6] : memref<256x128xbf16, #tpu.memory_space<vmem>>, vector<256x128xbf16>
    %7 = arith.extf %6 : vector<256x128xbf16> to vector<256x128xf32>
    %8 = arith.addf %5, %7 : vector<256x128xf32>
    %cst_7 = arith.constant 0.000000e+00 : f32
    %9 = vector.broadcast %cst_7 : f32 to vector<256x128xf32>
    %10 = arith.maximumf %8, %9 : vector<256x128xf32>
    %c0_8 = arith.constant 0 : index
    %c0_9 = arith.constant 0 : index
    %11 = vector.load %arg6[%c0_8, %c0_9] : memref<256x128xf32, #tpu.memory_space<vmem>>, vector<256x128xf32>
    tpu.vector_store %arg6[%c0_8, %c0_9], %10 {strides = array<i32>} : memref<256x128xf32, #tpu.memory_space<vmem>>, vector<256x128xf32>,
    return
  }
  func.func @transform_0(%arg0: i32, %arg1: i32) -> (i32, i32) {
    %c0_i32 = arith.constant 0 : i32
    %c0_i32_0 = arith.constant 0 : i32
    return %arg0, %c0_i32 : i32, i32
  }
  func.func @transform_1(%arg0: i32, %arg1: i32) -> (i32, i32) {
    %c0_i32 = arith.constant 0 : i32
    %c0_i32_0 = arith.constant 0 : i32
    return %c0_i32, %arg1 : i32, i32
  }
  func.func @transform_2(%arg0: i32, %arg1: i32) -> (i32, i32) {
    %c0_i32 = arith.constant 0 : i32
    %c0_i32_0 = arith.constant 0 : i32
    return %c0_i32, %arg1 : i32, i32
  }
  func.func @transform_3(%arg0: i32, %arg1: i32) -> (i32, i32) {
    %c0_i32 = arith.constant 0 : i32
    return %arg0, %arg1 : i32, i32
  }
  func.func @transform_4(%arg0: i32, %arg1: i32) -> (i32, i32) {
    %c0_i32 = arith.constant 0 : i32
    return %arg0, %arg1 : i32, i32
  }
}

</mosaic_0001>

<llo_original>
// kernel: basic_block_enc.2
$region0: #{basic_block_enc.2}
  #allocation0 [shape = 'u32[]', space=smem, size = 0x4, offset = 0x4, fixed_abs, tag = 'smem constant byte address 0x4 - core index']
  #allocation1 [shape = 'u32[144,128]{1,0:T(1,128)}', space=vmem, size = 0x12000, scoped, tag = 'internal scratch']
  %s0 = inlined_call_operand.vmem [shape: bf16[512,36], index: 0, kind: input, shape index: {}]
  %s1 = inlined_call_operand.vmem [shape: bf16[36,128], index: 1, kind: input, shape index: {}]
  %s2 = inlined_call_operand.vmem [shape: f32[1,128], index: 2, kind: input, shape index: {}]
  %s3 = inlined_call_operand.vmem [shape: bf16[512,128], index: 3, kind: output, shape index: {}]
  %s4 = sld [smem:[#allocation0]]
  $region45: #{basic_block_enc.2} parent=0
    _
  %s6 = ssub.s32 1, %s4
  %s7 = scalar_select 0, %s6, %s4
  loop: start=0, step=1, limit=4
  $region2: #{basic_block_enc.2} parent=0 // loop_pre_header
    _
  $region3: #{basic_block_enc.2} parent=0 // loop_header
    %s9 = sphi 0, %s13
    %p10 = scmp.ge.s32.totalorder %s9, 4
    %s16 = sphi 0, %s28
    %s17 = sphi 0, %s24
    %s18 = sphi 0, %s16
    %s19 = sphi 0, %s17
    %s20 = sphi 0, %s18
    %s21 = sphi 0, %s19
    %s31 = sphi 0, %s33
    %s34 = sphi 0, %s31
    %s35 = sphi 0, %s34
    %s51 = sphi 0, %s35
    %s57 = sphi 0, %s59
    %s60 = sphi 0, %s57
    %s61 = sphi 0, %s60
    %s77 = sphi 0, %s61
    %s83 = sphi 0, %s85
    %s86 = sphi 0, %s83
    %s87 = sphi 0, %s86
    %s103 = sphi 0, %s87
    %s111 = sphi 0, %s113
    %s114 = sphi 0, %s111
    %s115 = sphi 0, %s114
    %s131 = sphi 0, %s115
  $region4: #{basic_block_enc.2} parent=0 // loop_header_branch
    %12 = sbr.rel (%p10) target = $region8
  $region5: #{basic_block_enc.2} parent=0 // loop_body
    %s14 = ssub.s32 %s9, 1
    %s15 = ssub.s32 %s9, 2
    %s22 = sadd.s32 1, %s17
    %p23 = scmp.ge.s32.totalorder %s22, 1
    %s24 = scalar_select %p23, 0, %s22
    %s25 = sadd.s32 1, %s16
    %s26 = scalar_select %p23, %s25, %s16
    %p27 = scmp.ge.s32.totalorder %s26, 2
    %s28 = scalar_select %p27, 0, %s26
    %s29 = ssub.s32 %s16, %s28
    %p30 = scmp.eq.s32.totalorder %s29, 0
    %s32 = sadd.s32 %s31, 1
    %s33 = scalar_select %p30, %s31, %s32
    %p36 = pneg %p30
    %p37 = scmp.eq.s32.totalorder %s9, 1
    %p38 = por %p36, %p37
    %p39 = scmp.ne.s32.totalorder %s31, %s34
    %p40 = scmp.eq.s32.totalorder %s9, 0
    %p41 = por %p39, %p40
    %p42 = scmp.ne.s32.totalorder %s31, %s34
    %p43 = scmp.eq.s32.totalorder %s14, 1
    %p44 = por %p42, %p43
    %p45 = scmp.ne.s32.totalorder %s34, %s35
    %p46 = scmp.eq.s32.totalorder %s14, 0
    %p47 = por %p45, %p46
    %p48 = scmp.ne.s32.totalorder %s34, %s35
    %p49 = scmp.eq.s32.totalorder %s15, 1
    %p50 = por %p48, %p49
    %p52 = scmp.ne.s32.totalorder %s35, %s51
    %p53 = scmp.eq.s32.totalorder %s15, 0
    %p54 = por %p52, %p53
    %s55 = ssub.s32 %s17, %s24
    %p56 = scmp.eq.s32.totalorder %s55, 0
    %s58 = sadd.s32 %s57, 1
    %s59 = scalar_select %p56, %s57, %s58
    %p62 = pneg %p56
    %p63 = scmp.eq.s32.totalorder %s9, 1
    %p64 = por %p62, %p63
    %p65 = scmp.ne.s32.totalorder %s57, %s60
    %p66 = scmp.eq.s32.totalorder %s9, 0
    %p67 = por %p65, %p66
    %p68 = scmp.ne.s32.totalorder %s57, %s60
    %p69 = scmp.eq.s32.totalorder %s14, 1
    %p70 = por %p68, %p69
    %p71 = scmp.ne.s32.totalorder %s60, %s61
    %p72 = scmp.eq.s32.totalorder %s14, 0
    %p73 = por %p71, %p72
    %p74 = scmp.ne.s32.totalorder %s60, %s61
    %p75 = scmp.eq.s32.totalorder %s15, 1
    %p76 = por %p74, %p75
    %p78 = scmp.ne.s32.totalorder %s61, %s77
    %p79 = scmp.eq.s32.totalorder %s15, 0
    %p80 = por %p78, %p79
    %s81 = ssub.s32 %s17, %s24
    %p82 = scmp.eq.s32.totalorder %s81, 0
    %s84 = sadd.s32 %s83, 1
    %s85 = scalar_select %p82, %s83, %s84
    %p88 = pneg %p82
    %p89 = scmp.eq.s32.totalorder %s9, 1
    %p90 = por %p88, %p89
    %p91 = scmp.ne.s32.totalorder %s83, %s86
    %p92 = scmp.eq.s32.totalorder %s9, 0
    %p93 = por %p91, %p92
    %p94 = scmp.ne.s32.totalorder %s83, %s86
    %p95 = scmp.eq.s32.totalorder %s14, 1
    %p96 = por %p94, %p95
    %p97 = scmp.ne.s32.totalorder %s86, %s87
    %p98 = scmp.eq.s32.totalorder %s14, 0
    %p99 = por %p97, %p98
    %p100 = scmp.ne.s32.totalorder %s86, %s87
    %p101 = scmp.eq.s32.totalorder %s15, 1
    %p102 = por %p100, %p101
    %p104 = scmp.ne.s32.totalorder %s87, %s103
    %p105 = scmp.eq.s32.totalorder %s15, 0
    %p106 = por %p104, %p105
    %s107 = ssub.s32 %s16, %s28
    %s108 = ssub.s32 %s17, %s24
    %s109 = sor.u32 %s107, %s108
    %p110 = scmp.eq.s32.totalorder %s109, 0
    %s112 = sadd.s32 %s111, 1
    %s113 = scalar_select %p110, %s111, %s112
    %p116 = pneg %p110
    %p117 = scmp.eq.s32.totalorder %s9, 1
    %p118 = por %p116, %p117
    %p119 = scmp.ne.s32.totalorder %s111, %s114
    %p120 = scmp.eq.s32.totalorder %s9, 0
    %p121 = por %p119, %p120
    %p122 = scmp.ne.s32.totalorder %s111, %s114
    %p123 = scmp.eq.s32.totalorder %s14, 1
    %p124 = por %p122, %p123
    %p125 = scmp.ne.s32.totalorder %s114, %s115
    %p126 = scmp.eq.s32.totalorder %s14, 0
    %p127 = por %p125, %p126
    %p128 = scmp.ne.s32.totalorder %s114, %s115
    %p129 = scmp.eq.s32.totalorder %s15, 1
    %p130 = por %p128, %p129
    %p132 = scmp.ne.s32.totalorder %s115, %s131
    %p133 = scmp.eq.s32.totalorder %s15, 0
    %p134 = por %p132, %p133
    %p135 = scmp.le.s32.totalorder 1, %s9
    %p136 = scmp.lt.s32.totalorder %s9, 3
    %p137 = pnand %p135, %p136
    %p138 = pneg %p137
    // Predicated region
    $region9: #{basic_block_enc.2} parent=5 // pred_check
      _
    $region10: #{basic_block_enc.2} parent=5 // pred_check_branch
      %140 = sbr.rel (%p137) target = $region12
    $region11: #{basic_block_enc.2} parent=5 // pred_region
      %s141 = ssub.s32 %s9, 1
      // Predicated region
      $region13: #{basic_block_enc.2} parent=11 // pred_check
        %p142 = pneg %p73
      $region14: #{basic_block_enc.2} parent=11 // pred_check_branch
        %144 = sbr.rel (%p142) target = $region16
      $region15: #{basic_block_enc.2} parent=11 // pred_region
        %p145 = scmp.lt.s32.totalorder %s19, 0
        %s146 = scalar_select %p145, %s19, 0
        %s147 = smul.addr %s146, 4
        %s148 = scalar_lea.vmem %s1, %s147
      $region16: #{basic_block_enc.2} parent=11 // pred_fallthru
        _
      // Predicated region
      $region17: #{basic_block_enc.2} parent=11 // pred_check
        %p149 = pneg %p99
      $region18: #{basic_block_enc.2} parent=11 // pred_check_branch
        %151 = sbr.rel (%p149) target = $region20
      $region19: #{basic_block_enc.2} parent=11 // pred_region
        %p152 = scmp.lt.s32.totalorder %s19, 0
        %s153 = scalar_select %p152, %s19, 0
        %s154 = scalar_lea.vmem %s2, %s153
      $region20: #{basic_block_enc.2} parent=11 // pred_fallthru
        _
    $region12: #{basic_block_enc.2} parent=5 // pred_fallthru
      _
    %p155 = scmp.lt.s32.totalorder %s9, 2
    // Predicated region
    $region21: #{basic_block_enc.2} parent=5 // pred_check
      %p156 = pneg %p155
    $region22: #{basic_block_enc.2} parent=5 // pred_check_branch
      %158 = sbr.rel (%p156) target = $region24
    $region23: #{basic_block_enc.2} parent=5 // pred_region
      // Predicated region
      $region25: #{basic_block_enc.2} parent=23 // pred_check
        %p159 = pneg %p41
      $region26: #{basic_block_enc.2} parent=23 // pred_check_branch
        %161 = sbr.rel (%p159) target = $region28
      $region27: #{basic_block_enc.2} parent=23 // pred_region
        %s162 = smul.u32 32, %s16
        %p163 = scmp.lt.s32.totalorder %s162, 63
        %s164 = scalar_select %p163, %s162, 63
        %s165 = smul.addr %s164, 4
        %s166 = scalar_lea.vmem %s0, %s165
        %s167 = smul.u32 32, %s16
      $region28: #{basic_block_enc.2} parent=23 // pred_fallthru
        _
    $region24: #{basic_block_enc.2} parent=5 // pred_fallthru
      _
    %p168 = scmp.le.s32.totalorder 1, %s9
    %p169 = scmp.lt.s32.totalorder %s9, 3
    %p170 = pnand %p168, %p169
    %p171 = pneg %p170
    // Predicated region
    $region29: #{basic_block_enc.2} parent=5 // pred_check
      _
    $region30: #{basic_block_enc.2} parent=5 // pred_check_branch
      %173 = sbr.rel (%p170) target = $region32
    $region31: #{basic_block_enc.2} parent=5 // pred_region
      %s174 = ssub.s32 %s9, 1
      %s175 = smul.u32 32, %s18
      %p176 = scmp.lt.s32.totalorder %s175, 63
      %s177 = scalar_select %p176, %s175, 63
      %s178 = smul.addr %s177, 4
      %s179 = scalar_lea.vmem %s0, %s178
      %p180 = pneg %p47
      %p181 = pneg %p44
      %p182 = scmp.lt.s32.totalorder %s19, 0
      %s183 = scalar_select %p182, %s19, 0
      %s184 = smul.addr %s183, 4
      %s185 = scalar_lea.vmem %s1, %s184
      %p186 = pneg %p73
      %p187 = pneg %p70
      %p188 = scmp.lt.s32.totalorder %s19, 0
      %s189 = scalar_select %p188, %s19, 0
      %s190 = scalar_lea.vmem %s2, %s189
      %p191 = pneg %p99
      %p192 = pneg %p96
      %p193 = pneg %p127
      %p194 = pneg %p124
      %s195 = smul.u32 32, %s18
      %p196 = scmp.lt.s32.totalorder %s195, 63
      %s197 = scalar_select %p196, %s195, 63
      %p198 = scmp.lt.s32.totalorder %s19, 0
      %s199 = scalar_select %p198, %s19, 0
      %s200 = sadd.s32 %s199, %s197
      %s201 = smul.addr %s200, 4
      %s202 = scalar_lea.vmem %s3, %s201
      %s203 = smul.u32 32, %s18
      %p204 = scmp.lt.s32.totalorder %s203, 63
      %s205 = scalar_select %p204, %s203, 63
      %s206 = smul.addr %s205, 4
      %s207 = scalar_lea.vmem %s0, %s206
      %s208 = smul.u32 32, %s18
      %p209 = scmp.lt.s32.totalorder %s19, 0
      %s210 = scalar_select %p209, %s19, 0
      %s211 = smul.addr %s210, 4
      %s212 = scalar_lea.vmem %s1, %s211
      %p213 = scmp.lt.s32.totalorder %s19, 0
      %s214 = scalar_select %p213, %s19, 0
      %s215 = scalar_lea.vmem %s2, %s214
      %s216 = smul.u32 32, %s18
      %p217 = scmp.lt.s32.totalorder %s216, 63
      %s218 = scalar_select %p217, %s216, 63
      %p219 = scmp.lt.s32.totalorder %s19, 0
      %s220 = scalar_select %p219, %s19, 0
      %s221 = sadd.s32 %s220, %s218
      %s222 = smul.addr %s221, 4
      %s223 = scalar_lea.vmem %s3, %s222
      %s224 = smul.u32 32, %s18
      %v226 = vld [vmem:[%s207] sm:$0xf]
      %v227 = vld [vmem:[%s207 + $0x4] sm:$0xf]
      %v228 = vld [vmem:[%s207 + $0x8] sm:$0xf]
      %v229 = vld [vmem:[%s207 + $0xc] sm:$0xf]
      %v230 = vld [vmem:[%s207 + $0x10] sm:$0xf]
      %v231 = vld [vmem:[%s207 + $0x14] sm:$0xf]
      %v232 = vld [vmem:[%s207 + $0x18] sm:$0xf]
      %v233 = vld [vmem:[%s207 + $0x1c] sm:$0xf]
      %v234 = vld [vmem:[%s207 + $0x20] sm:$0xf]
      %v235 = vld [vmem:[%s207 + $0x24] sm:$0xf]
      %v236 = vld [vmem:[%s207 + $0x28] sm:$0xf]
      %v237 = vld [vmem:[%s207 + $0x2c] sm:$0xf]
      %v238 = vld [vmem:[%s207 + $0x30] sm:$0xf]
      %v239 = vld [vmem:[%s207 + $0x34] sm:$0xf]
      %v240 = vld [vmem:[%s207 + $0x38] sm:$0xf]
      %v241 = vld [vmem:[%s207 + $0x3c] sm:$0xf]
      %v242 = vld [vmem:[%s207 + $0x40] sm:$0xf]
      %v243 = vld [vmem:[%s207 + $0x44] sm:$0xf]
      %v244 = vld [vmem:[%s207 + $0x48] sm:$0xf]
      %v245 = vld [vmem:[%s207 + $0x4c] sm:$0xf]
      %v246 = vld [vmem:[%s207 + $0x50] sm:$0xf]
      %v247 = vld [vmem:[%s207 + $0x54] sm:$0xf]
      %v248 = vld [vmem:[%s207 + $0x58] sm:$0xf]
      %v249 = vld [vmem:[%s207 + $0x5c] sm:$0xf]
      %v250 = vld [vmem:[%s207 + $0x60] sm:$0xf]
      %v251 = vld [vmem:[%s207 + $0x64] sm:$0xf]
      %v252 = vld [vmem:[%s207 + $0x68] sm:$0xf]
      %v253 = vld [vmem:[%s207 + $0x6c] sm:$0xf]
      %v254 = vld [vmem:[%s207 + $0x70] sm:$0xf]
      %v255 = vld [vmem:[%s207 + $0x74] sm:$0xf]
      %v256 = vld [vmem:[%s207 + $0x78] sm:$0xf]
      %v257 = vld [vmem:[%s207 + $0x7c] sm:$0xf]
      %v258 = vld [vmem:[%s212] sm:$0xf]
      %v259 = vld [vmem:[%s212 + $0x4] sm:$0xf]
      %v260 = vld [vmem:[%s212 + $0x8] sm:$0xf]
      %v261 = vld [vmem:[%s212 + $0xc] sm:$0xf]
      %v262 = vld [vmem:[%s212 + $0x10] sm:$0x3]
      %v263 = vld [vmem:[%s215] sm:$0x1]
      %v265 = vlaneseq
      %v266 = vshrl.u32 %v265, 7
      %v267 = vsub.s32 0, %v266
      %v268 = vrot.slane %v263, %v267
      %v302 = vunpack.c.l.b16 %v226
      %v303 = vunpack.c.l.b16 %v227
      %v304 = vunpack.c.l.b16 %v228
      %v305 = vunpack.c.l.b16 %v229
      %v306 = vunpack.c.l.b16 %v230
      %v307 = vunpack.c.l.b16 %v231
      %v308 = vunpack.c.l.b16 %v232
      %v309 = vunpack.c.l.b16 %v233
      %v310 = vunpack.c.l.b16 %v234
      %v311 = vunpack.c.l.b16 %v235
      %v312 = vunpack.c.l.b16 %v236
      %v313 = vunpack.c.l.b16 %v237
      %v314 = vunpack.c.l.b16 %v238
      %v315 = vunpack.c.l.b16 %v239
      %v316 = vunpack.c.l.b16 %v240
      %v317 = vunpack.c.l.b16 %v241
      %v318 = vunpack.c.l.b16 %v242
      %v319 = vunpack.c.l.b16 %v243
      %v320 = vunpack.c.l.b16 %v244
      %v321 = vunpack.c.l.b16 %v245
      %v322 = vunpack.c.l.b16 %v246
      %v323 = vunpack.c.l.b16 %v247
      %v324 = vunpack.c.l.b16 %v248
      %v325 = vunpack.c.l.b16 %v249
      %v326 = vunpack.c.l.b16 %v250
      %v327 = vunpack.c.l.b16 %v251
      %v328 = vunpack.c.l.b16 %v252
      %v329 = vunpack.c.l.b16 %v253
      %v330 = vunpack.c.l.b16 %v254
      %v331 = vunpack.c.l.b16 %v255
      %v332 = vunpack.c.l.b16 %v256
      %v333 = vunpack.c.l.b16 %v257
      %v334 = vpack.c.b16 %v303, %v302
      %v335 = vpack.c.b16 %v305, %v304
      %v336 = vpack.c.b16 %v307, %v306
      %v337 = vpack.c.b16 %v309, %v308
      %v338 = vpack.c.b16 %v311, %v310
      %v339 = vpack.c.b16 %v313, %v312
      %v340 = vpack.c.b16 %v315, %v314
      %v341 = vpack.c.b16 %v317, %v316
      %v342 = vpack.c.b16 %v319, %v318
      %v343 = vpack.c.b16 %v321, %v320
      %v344 = vpack.c.b16 %v323, %v322
      %v345 = vpack.c.b16 %v325, %v324
      %v346 = vpack.c.b16 %v327, %v326
      %v347 = vpack.c.b16 %v329, %v328
      %v348 = vpack.c.b16 %v331, %v330
      %v349 = vpack.c.b16 %v333, %v332
      %v355 = vunpack.c.l.b16 %v258
      %v356 = vunpack.c.l.b16 %v259
      %v357 = vunpack.c.l.b16 %v260
      %v358 = vunpack.c.l.b16 %v261
      %v359 = vunpack.c.l.b16 %v262
      %v360 = vpack.c.b16 %v356, %v355
      %v361 = vpack.c.b16 %v358, %v357
      %v362 = vpack.c.b16 %v359, %v359
      %vm365 = vcmask 293888
      %v367 = vsel %vm365, %v334, 0
      %v370 = vsel %vm365, %v335, 0
      %v373 = vsel %vm365, %v336, 0
      %v376 = vsel %vm365, %v337, 0
      %v379 = vsel %vm365, %v338, 0
      %v382 = vsel %vm365, %v339, 0
      %v385 = vsel %vm365, %v340, 0
      %v388 = vsel %vm365, %v341, 0
      %v391 = vsel %vm365, %v342, 0
      %v394 = vsel %vm365, %v343, 0
      %v397 = vsel %vm365, %v344, 0
      %v400 = vsel %vm365, %v345, 0
      %v403 = vsel %vm365, %v346, 0
      %v406 = vsel %vm365, %v347, 0
      %v409 = vsel %vm365, %v348, 0
      %v412 = vsel %vm365, %v349, 0
      %vm414 = vcmask 1041408
      %v416 = vsel %vm414, %v362, 0
      %418 = vmatprep.subr.bf16.mxu0 0
      %419 = vmatpush1.bf16.msra.mxu0 %v360
      %420 = vmatprep.subr.bf16.mxu0 0
      %421 = vmatpush1.bf16.msra.mxu0 %v361
      %422 = vmatprep.subr.bf16.mxu0 0
      %423 = vmatpush1.bf16.msra.mxu0 %v416
      %424 = vmatprep.subr.bf16.mxu0 0
      %425 = vmatpush1.bf16.msra.mxu0 0
      %426 = vmatprep.subr.bf16.mxu0 0
      %427 = vmatpush1.bf16.msra.mxu0 0
      %428 = vmatprep.subr.bf16.mxu0 0
      %429 = vmatpush1.bf16.msra.mxu0 0
      %430 = vmatprep.subr.bf16.mxu0 0
      %431 = vmatpush1.bf16.msra.mxu0 0
      %432 = vmatprep.subr.bf16.mxu0 0
      %433 = vmatpush1.bf16.msra.mxu0 0
      %434 = vmatprep.subr.bf16.mxu0 0
      %435 = vmatpush1.bf16.msra.mxu0 0
      %436 = vmatprep.subr.bf16.mxu0 0
      %437 = vmatpush1.bf16.msra.mxu0 0
      %438 = vmatprep.subr.bf16.mxu0 0
      %439 = vmatpush1.bf16.msra.mxu0 0
      %440 = vmatprep.subr.bf16.mxu0 0
      %441 = vmatpush1.bf16.msra.mxu0 0
      %442 = vmatprep.subr.bf16.mxu0 0
      %443 = vmatpush1.bf16.msra.mxu0 0
      %444 = vmatprep.subr.bf16.mxu0 0
      %445 = vmatpush1.bf16.msra.mxu0 0
      %446 = vmatprep.subr.bf16.mxu0 0
      %447 = vmatpush1.bf16.msra.mxu0 0
      %448 = vmatprep.subr.bf16.mxu0 0
      %449 = vmatpush1.bf16.msra.mxu0 0
      %450 = vmatprep.mubr.bf16.mxu0 0
      %451 = vmatmul.mubr.bf16.gmra.mrb[0].mxu0 %v367
      %v452 = vpop.f32.mrb[0].mxu0
      %v453 = vadd.f32 %v268, %v452
      %v454 = vpop.f32.mrb[0].mxu0
      %v455 = vpop.f32.mrb[0].mxu0
      %v456 = vadd.f32 %v268, %v455
      %v457 = vpop.f32.mrb[0].mxu0
      %458 = vmatprep.mubr.bf16.mxu0 0
      %459 = vmatmul.mubr.bf16.gmra.mrb[0].mxu0 %v370
      %v460 = vpop.f32.mrb[0].mxu0
      %v461 = vadd.f32 %v268, %v460
      %v462 = vpop.f32.mrb[0].mxu0
      %v463 = vpop.f32.mrb[0].mxu0
      %v464 = vadd.f32 %v268, %v463
      %v465 = vpop.f32.mrb[0].mxu0
      %466 = vmatprep.mubr.bf16.mxu0 0
      %467 = vmatmul.mubr.bf16.gmra.mrb[0].mxu0 %v373
      %v468 = vpop.f32.mrb[0].mxu0
      %v469 = vadd.f32 %v268, %v468
      %v470 = vpop.f32.mrb[0].mxu0
      %v471 = vpop.f32.mrb[0].mxu0
      %v472 = vadd.f32 %v268, %v471
      %v473 = vpop.f32.mrb[0].mxu0
      %474 = vmatprep.mubr.bf16.mxu0 0
      %475 = vmatmul.mubr.bf16.gmra.mrb[0].mxu0 %v376
      %v476 = vpop.f32.mrb[0].mxu0
      %v477 = vadd.f32 %v268, %v476
      %v478 = vpop.f32.mrb[0].mxu0
      %v479 = vpop.f32.mrb[0].mxu0
      %v480 = vadd.f32 %v268, %v479
      %v481 = vpop.f32.mrb[0].mxu0
      %482 = vmatprep.mubr.bf16.mxu0 0
      %483 = vmatmul.mubr.bf16.gmra.mrb[0].mxu0 %v379
      %v484 = vpop.f32.mrb[0].mxu0
      %v485 = vadd.f32 %v268, %v484
      %v486 = vpop.f32.mrb[0].mxu0
      %v487 = vpop.f32.mrb[0].mxu0
      %v488 = vadd.f32 %v268, %v487
      %v489 = vpop.f32.mrb[0].mxu0
      %490 = vmatprep.mubr.bf16.mxu0 0
      %491 = vmatmul.mubr.bf16.gmra.mrb[0].mxu0 %v382
      %v492 = vpop.f32.mrb[0].mxu0
      %v493 = vadd.f32 %v268, %v492
      %v494 = vpop.f32.mrb[0].mxu0
      %v495 = vpop.f32.mrb[0].mxu0
      %v496 = vadd.f32 %v268, %v495
      %v497 = vpop.f32.mrb[0].mxu0
      %498 = vmatprep.mubr.bf16.mxu0 0
      %499 = vmatmul.mubr.bf16.gmra.mrb[0].mxu0 %v385
      %v500 = vpop.f32.mrb[0].mxu0
      %v501 = vadd.f32 %v268, %v500
      %v502 = vpop.f32.mrb[0].mxu0
      %v503 = vpop.f32.mrb[0].mxu0
      %v504 = vadd.f32 %v268, %v503
      %v505 = vpop.f32.mrb[0].mxu0
      %506 = vmatprep.mubr.bf16.mxu0 0
      %507 = vmatmul.mubr.bf16.gmra.mrb[0].mxu0 %v388
      %v508 = vpop.f32.mrb[0].mxu0
      %v509 = vadd.f32 %v268, %v508
      %v510 = vpop.f32.mrb[0].mxu0
      %v511 = vpop.f32.mrb[0].mxu0
      %v512 = vadd.f32 %v268, %v511
      %v513 = vpop.f32.mrb[0].mxu0
      %514 = vmatprep.mubr.bf16.mxu0 0
      %515 = vmatmul.mubr.bf16.gmra.mrb[0].mxu0 %v391
      %v516 = vpop.f32.mrb[0].mxu0
      %v517 = vadd.f32 %v268, %v516
      %v518 = vpop.f32.mrb[0].mxu0
      %v519 = vpop.f32.mrb[0].mxu0
      %v520 = vadd.f32 %v268, %v519
      %v521 = vpop.f32.mrb[0].mxu0
      %522 = vmatprep.mubr.bf16.mxu0 0
      %523 = vmatmul.mubr.bf16.gmra.mrb[0].mxu0 %v394
      %v524 = vpop.f32.mrb[0].mxu0
      %v525 = vadd.f32 %v268, %v524
      %v526 = vpop.f32.mrb[0].mxu0
      %v527 = vpop.f32.mrb[0].mxu0
      %v528 = vadd.f32 %v268, %v527
      %v529 = vpop.f32.mrb[0].mxu0
      %530 = vmatprep.mubr.bf16.mxu0 0
      %531 = vmatmul.mubr.bf16.gmra.mrb[0].mxu0 %v397
      %v532 = vpop.f32.mrb[0].mxu0
      %v533 = vadd.f32 %v268, %v532
      %v534 = vpop.f32.mrb[0].mxu0
      %v535 = vpop.f32.mrb[0].mxu0
      %v536 = vadd.f32 %v268, %v535
      %v537 = vpop.f32.mrb[0].mxu0
      %538 = vmatprep.mubr.bf16.mxu0 0
      %539 = vmatmul.mubr.bf16.gmra.mrb[0].mxu0 %v400
      %v540 = vpop.f32.mrb[0].mxu0
      %v541 = vadd.f32 %v268, %v540
      %v542 = vpop.f32.mrb[0].mxu0
      %v543 = vpop.f32.mrb[0].mxu0
      %v544 = vadd.f32 %v268, %v543
      %v545 = vpop.f32.mrb[0].mxu0
      %546 = vmatprep.mubr.bf16.mxu0 0
      %547 = vmatmul.mubr.bf16.gmra.mrb[0].mxu0 %v403
      %v548 = vpop.f32.mrb[0].mxu0
      %v549 = vadd.f32 %v268, %v548
      %v550 = vpop.f32.mrb[0].mxu0
      %v551 = vpop.f32.mrb[0].mxu0
      %v552 = vadd.f32 %v268, %v551
      %v553 = vpop.f32.mrb[0].mxu0
      %554 = vmatprep.mubr.bf16.mxu0 0
      %555 = vmatmul.mubr.bf16.gmra.mrb[0].mxu0 %v406
      %v556 = vpop.f32.mrb[0].mxu0
      %v557 = vadd.f32 %v268, %v556
      %v558 = vpop.f32.mrb[0].mxu0
      %v559 = vpop.f32.mrb[0].mxu0
      %v560 = vadd.f32 %v268, %v559
      %v561 = vpop.f32.mrb[0].mxu0
      %562 = vmatprep.mubr.bf16.mxu0 0
      %563 = vmatmul.mubr.bf16.gmra.mrb[0].mxu0 %v409
      %v564 = vpop.f32.mrb[0].mxu0
      %v565 = vadd.f32 %v268, %v564
      %v566 = vpop.f32.mrb[0].mxu0
      %v567 = vpop.f32.mrb[0].mxu0
      %v568 = vadd.f32 %v268, %v567
      %v569 = vpop.f32.mrb[0].mxu0
      %570 = vmatprep.mubr.bf16.mxu0 0
      %571 = vmatmul.mubr.bf16.gmra.mrb[0].mxu0 %v412
      %v572 = vpop.f32.mrb[0].mxu0
      %v573 = vadd.f32 %v268, %v572
      %v574 = vpop.f32.mrb[0].mxu0
      %v575 = vpop.f32.mrb[0].mxu0
      %v576 = vadd.f32 %v268, %v575
      %v577 = vpop.f32.mrb[0].mxu0
      %578 = vdwg.mxu0
      %v579 = vmax.f32 %v453, 0.0
      %v580 = vmax.f32 %v456, 0.0
      %v581 = vmax.f32 %v461, 0.0
      %v582 = vmax.f32 %v464, 0.0
      %v583 = vmax.f32 %v469, 0.0
      %v584 = vmax.f32 %v472, 0.0
      %v585 = vmax.f32 %v477, 0.0
      %v586 = vmax.f32 %v480, 0.0
      %v587 = vmax.f32 %v485, 0.0
      %v588 = vmax.f32 %v488, 0.0
      %v589 = vmax.f32 %v493, 0.0
      %v590 = vmax.f32 %v496, 0.0
      %v591 = vmax.f32 %v501, 0.0
      %v592 = vmax.f32 %v504, 0.0
      %v593 = vmax.f32 %v509, 0.0
      %v594 = vmax.f32 %v512, 0.0
      %v595 = vmax.f32 %v517, 0.0
      %v596 = vmax.f32 %v520, 0.0
      %v597 = vmax.f32 %v525, 0.0
      %v598 = vmax.f32 %v528, 0.0
      %v599 = vmax.f32 %v533, 0.0
      %v600 = vmax.f32 %v536, 0.0
      %v601 = vmax.f32 %v541, 0.0
      %v602 = vmax.f32 %v544, 0.0
      %v603 = vmax.f32 %v549, 0.0
      %v604 = vmax.f32 %v552, 0.0
      %v605 = vmax.f32 %v557, 0.0
      %v606 = vmax.f32 %v560, 0.0
      %v607 = vmax.f32 %v565, 0.0
      %v608 = vmax.f32 %v568, 0.0
      %v609 = vmax.f32 %v573, 0.0
      %v610 = vmax.f32 %v576, 0.0
      %v611 = vpack.c.bf16 %v580, %v579
      %v612 = vpack.c.bf16 %v582, %v581
      %v613 = vpack.c.bf16 %v584, %v583
      %v614 = vpack.c.bf16 %v586, %v585
      %v615 = vpack.c.bf16 %v588, %v587
      %v616 = vpack.c.bf16 %v590, %v589
      %v617 = vpack.c.bf16 %v592, %v591
      %v618 = vpack.c.bf16 %v594, %v593
      %v619 = vpack.c.bf16 %v596, %v595
      %v620 = vpack.c.bf16 %v598, %v597
      %v621 = vpack.c.bf16 %v600, %v599
      %v622 = vpack.c.bf16 %v602, %v601
      %v623 = vpack.c.bf16 %v604, %v603
      %v624 = vpack.c.bf16 %v606, %v605
      %v625 = vpack.c.bf16 %v608, %v607
      %v626 = vpack.c.bf16 %v610, %v609
      %v643 = vunpack.c.l.b16 %v611
      %v644 = vunpack.c.h.b16 %v611
      %v645 = vunpack.c.l.b16 %v612
      %v646 = vunpack.c.h.b16 %v612
      %v647 = vunpack.c.l.b16 %v613
      %v648 = vunpack.c.h.b16 %v613
      %v649 = vunpack.c.l.b16 %v614
      %v650 = vunpack.c.h.b16 %v614
      %v651 = vunpack.c.l.b16 %v615
      %v652 = vunpack.c.h.b16 %v615
      %v653 = vunpack.c.l.b16 %v616
      %v654 = vunpack.c.h.b16 %v616
      %v655 = vunpack.c.l.b16 %v617
      %v656 = vunpack.c.h.b16 %v617
      %v657 = vunpack.c.l.b16 %v618
      %v658 = vunpack.c.h.b16 %v618
      %v659 = vunpack.c.l.b16 %v619
      %v660 = vunpack.c.h.b16 %v619
      %v661 = vunpack.c.l.b16 %v620
      %v662 = vunpack.c.h.b16 %v620
      %v663 = vunpack.c.l.b16 %v621
      %v664 = vunpack.c.h.b16 %v621
      %v665 = vunpack.c.l.b16 %v622
      %v666 = vunpack.c.h.b16 %v622
      %v667 = vunpack.c.l.b16 %v623
      %v668 = vunpack.c.h.b16 %v623
      %v669 = vunpack.c.l.b16 %v624
      %v670 = vunpack.c.h.b16 %v624
      %v671 = vunpack.c.l.b16 %v625
      %v672 = vunpack.c.h.b16 %v625
      %v673 = vunpack.c.l.b16 %v626
      %v674 = vunpack.c.h.b16 %v626
      %v675 = vpack.c.b16 %v643, %v643
      %v676 = vpack.c.b16 %v644, %v644
      %v677 = vpack.c.b16 %v645, %v645
      %v678 = vpack.c.b16 %v646, %v646
      %v679 = vpack.c.b16 %v647, %v647
      %v680 = vpack.c.b16 %v648, %v648
      %v681 = vpack.c.b16 %v649, %v649
      %v682 = vpack.c.b16 %v650, %v650
      %v683 = vpack.c.b16 %v651, %v651
      %v684 = vpack.c.b16 %v652, %v652
      %v685 = vpack.c.b16 %v653, %v653
      %v686 = vpack.c.b16 %v654, %v654
      %v687 = vpack.c.b16 %v655, %v655
      %v688 = vpack.c.b16 %v656, %v656
      %v689 = vpack.c.b16 %v657, %v657
      %v690 = vpack.c.b16 %v658, %v658
      %v691 = vpack.c.b16 %v659, %v659
      %v692 = vpack.c.b16 %v660, %v660
      %v693 = vpack.c.b16 %v661, %v661
      %v694 = vpack.c.b16 %v662, %v662
      %v695 = vpack.c.b16 %v663, %v663
      %v696 = vpack.c.b16 %v664, %v664
      %v697 = vpack.c.b16 %v665, %v665
      %v698 = vpack.c.b16 %v666, %v666
      %v699 = vpack.c.b16 %v667, %v667
      %v700 = vpack.c.b16 %v668, %v668
      %v701 = vpack.c.b16 %v669, %v669
      %v702 = vpack.c.b16 %v670, %v670
      %v703 = vpack.c.b16 %v671, %v671
      %v704 = vpack.c.b16 %v672, %v672
      %v705 = vpack.c.b16 %v673, %v673
      %v706 = vpack.c.b16 %v674, %v674
      %739 = vst [vmem:[%s223] sm:$0xf] %v675
      %740 = vst [vmem:[%s223 + $0x4] sm:$0xf] %v676
      %741 = vst [vmem:[%s223 + $0x8] sm:$0xf] %v677
      %742 = vst [vmem:[%s223 + $0xc] sm:$0xf] %v678
      %743 = vst [vmem:[%s223 + $0x10] sm:$0xf] %v679
      %744 = vst [vmem:[%s223 + $0x14] sm:$0xf] %v680
      %745 = vst [vmem:[%s223 + $0x18] sm:$0xf] %v681
      %746 = vst [vmem:[%s223 + $0x1c] sm:$0xf] %v682
      %747 = vst [vmem:[%s223 + $0x20] sm:$0xf] %v683
      %748 = vst [vmem:[%s223 + $0x24] sm:$0xf] %v684
      %749 = vst [vmem:[%s223 + $0x28] sm:$0xf] %v685
      %750 = vst [vmem:[%s223 + $0x2c] sm:$0xf] %v686
      %751 = vst [vmem:[%s223 + $0x30] sm:$0xf] %v687
      %752 = vst [vmem:[%s223 + $0x34] sm:$0xf] %v688
      %753 = vst [vmem:[%s223 + $0x38] sm:$0xf] %v689
      %754 = vst [vmem:[%s223 + $0x3c] sm:$0xf] %v690
      %755 = vst [vmem:[%s223 + $0x40] sm:$0xf] %v691
      %756 = vst [vmem:[%s223 + $0x44] sm:$0xf] %v692
      %757 = vst [vmem:[%s223 + $0x48] sm:$0xf] %v693
      %758 = vst [vmem:[%s223 + $0x4c] sm:$0xf] %v694
      %759 = vst [vmem:[%s223 + $0x50] sm:$0xf] %v695
      %760 = vst [vmem:[%s223 + $0x54] sm:$0xf] %v696
      %761 = vst [vmem:[%s223 + $0x58] sm:$0xf] %v697
      %762 = vst [vmem:[%s223 + $0x5c] sm:$0xf] %v698
      %763 = vst [vmem:[%s223 + $0x60] sm:$0xf] %v699
      %764 = vst [vmem:[%s223 + $0x64] sm:$0xf] %v700
      %765 = vst [vmem:[%s223 + $0x68] sm:$0xf] %v701
      %766 = vst [vmem:[%s223 + $0x6c] sm:$0xf] %v702
      %767 = vst [vmem:[%s223 + $0x70] sm:$0xf] %v703
      %768 = vst [vmem:[%s223 + $0x74] sm:$0xf] %v704
      %769 = vst [vmem:[%s223 + $0x78] sm:$0xf] %v705
      %770 = vst [vmem:[%s223 + $0x7c] sm:$0xf] %v706
      %s771 = smul.u32 32, %s18
      %p772 = scmp.lt.s32.totalorder %s771, 63
      %s773 = scalar_select %p772, %s771, 63
      %p774 = scmp.lt.s32.totalorder %s19, 0
      %s775 = scalar_select %p774, %s19, 0
      %s776 = sadd.s32 %s775, %s773
      %s777 = smul.addr %s776, 4
      %s778 = scalar_lea.vmem %s3, %s777
      // Predicated region
      $region33: #{basic_block_enc.2} parent=31 // pred_check
        %p779 = pneg %p124
      $region34: #{basic_block_enc.2} parent=31 // pred_check_branch
        %781 = sbr.rel (%p779) target = $region36
      $region35: #{basic_block_enc.2} parent=31 // pred_region
        %s782 = smul.u32 32, %s18
      $region36: #{basic_block_enc.2} parent=31 // pred_fallthru
        _
    $region32: #{basic_block_enc.2} parent=5 // pred_fallthru
      _
    %p783 = scmp.le.s32.totalorder 2, %s9
    // Predicated region
    $region37: #{basic_block_enc.2} parent=5 // pred_check
      %p784 = pneg %p783
    $region38: #{basic_block_enc.2} parent=5 // pred_check_branch
      %786 = sbr.rel (%p784) target = $region40
    $region39: #{basic_block_enc.2} parent=5 // pred_region
      %s787 = ssub.s32 %s9, 2
      // Predicated region
      $region41: #{basic_block_enc.2} parent=39 // pred_check
        %p788 = pneg %p130
      $region42: #{basic_block_enc.2} parent=39 // pred_check_branch
        %790 = sbr.rel (%p788) target = $region44
      $region43: #{basic_block_enc.2} parent=39 // pred_region
        %s791 = smul.u32 32, %s20
        %p792 = scmp.lt.s32.totalorder %s791, 63
        %s793 = scalar_select %p792, %s791, 63
        %p794 = scmp.lt.s32.totalorder %s21, 0
        %s795 = scalar_select %p794, %s21, 0
        %s796 = sadd.s32 %s795, %s793
        %s797 = smul.addr %s796, 4
        %s798 = scalar_lea.vmem %s3, %s797
      $region44: #{basic_block_enc.2} parent=39 // pred_fallthru
        _
    $region40: #{basic_block_enc.2} parent=5 // pred_fallthru
      _
  $region6: #{basic_block_enc.2} parent=0 // loop_footer
    %s13 = sadd.s32 1, %s9
  $region7: #{basic_block_enc.2} parent=0 // loop_footer_branch
    %8 = sbr.rel target = $region3
  $region8: #{basic_block_enc.2} parent=0 // loop_exit
    _

// kernel: basic_block_enc.3
$region0: #{basic_block_enc.3}
  #allocation0 [shape = 'u32[]', space=smem, size = 0x4, offset = 0x4, fixed_abs, tag = 'smem constant byte address 0x4 - core index']
  #allocation1 [shape = 'u32[144,128]{1,0:T(1,128)}', space=vmem, size = 0x12000, scoped, tag = 'internal scratch']
  %s0 = inlined_call_operand.vmem [shape: bf16[512,36], index: 0, kind: input, shape index: {}]
  %s1 = inlined_call_operand.vmem [shape: bf16[36,128], index: 1, kind: input, shape index: {}]
  %s2 = inlined_call_operand.vmem [shape: f32[1,128], index: 2, kind: input, shape index: {}]
  %s3 = inlined_call_operand.vmem [shape: bf16[512,128], index: 3, kind: input, shape index: {}]
  %s4 = inlined_call_operand.vmem [shape: f32[512,128], index: 4, kind: output, shape index: {}]
  %s5 = sld [smem:[#allocation0]]
  $region49: #{basic_block_enc.3} parent=0
    _
  %s7 = ssub.s32 1, %s5
  %s8 = scalar_select 0, %s7, %s5
  loop: start=0, step=1, limit=4
  $region2: #{basic_block_enc.3} parent=0 // loop_pre_header
    _
  $region3: #{basic_block_enc.3} parent=0 // loop_header
    %s10 = sphi 0, %s14
    %p11 = scmp.ge.s32.totalorder %s10, 4
    %s17 = sphi 0, %s29
    %s18 = sphi 0, %s25
    %s19 = sphi 0, %s17
    %s20 = sphi 0, %s18
    %s21 = sphi 0, %s19
    %s22 = sphi 0, %s20
    %s32 = sphi 0, %s34
    %s35 = sphi 0, %s32
    %s36 = sphi 0, %s35
    %s52 = sphi 0, %s36
    %s58 = sphi 0, %s60
    %s61 = sphi 0, %s58
    %s62 = sphi 0, %s61
    %s78 = sphi 0, %s62
    %s84 = sphi 0, %s86
    %s87 = sphi 0, %s84
    %s88 = sphi 0, %s87
    %s104 = sphi 0, %s88
    %s112 = sphi 0, %s114
    %s115 = sphi 0, %s112
    %s116 = sphi 0, %s115
    %s132 = sphi 0, %s116
    %s140 = sphi 0, %s142
    %s143 = sphi 0, %s140
    %s144 = sphi 0, %s143
    %s160 = sphi 0, %s144
  $region4: #{basic_block_enc.3} parent=0 // loop_header_branch
    %13 = sbr.rel (%p11) target = $region8
  $region5: #{basic_block_enc.3} parent=0 // loop_body
    %s15 = ssub.s32 %s10, 1
    %s16 = ssub.s32 %s10, 2
    %s23 = sadd.s32 1, %s18
    %p24 = scmp.ge.s32.totalorder %s23, 1
    %s25 = scalar_select %p24, 0, %s23
    %s26 = sadd.s32 1, %s17
    %s27 = scalar_select %p24, %s26, %s17
    %p28 = scmp.ge.s32.totalorder %s27, 2
    %s29 = scalar_select %p28, 0, %s27
    %s30 = ssub.s32 %s17, %s29
    %p31 = scmp.eq.s32.totalorder %s30, 0
    %s33 = sadd.s32 %s32, 1
    %s34 = scalar_select %p31, %s32, %s33
    %p37 = pneg %p31
    %p38 = scmp.eq.s32.totalorder %s10, 1
    %p39 = por %p37, %p38
    %p40 = scmp.ne.s32.totalorder %s32, %s35
    %p41 = scmp.eq.s32.totalorder %s10, 0
    %p42 = por %p40, %p41
    %p43 = scmp.ne.s32.totalorder %s32, %s35
    %p44 = scmp.eq.s32.totalorder %s15, 1
    %p45 = por %p43, %p44
    %p46 = scmp.ne.s32.totalorder %s35, %s36
    %p47 = scmp.eq.s32.totalorder %s15, 0
    %p48 = por %p46, %p47
    %p49 = scmp.ne.s32.totalorder %s35, %s36
    %p50 = scmp.eq.s32.totalorder %s16, 1
    %p51 = por %p49, %p50
    %p53 = scmp.ne.s32.totalorder %s36, %s52
    %p54 = scmp.eq.s32.totalorder %s16, 0
    %p55 = por %p53, %p54
    %s56 = ssub.s32 %s18, %s25
    %p57 = scmp.eq.s32.totalorder %s56, 0
    %s59 = sadd.s32 %s58, 1
    %s60 = scalar_select %p57, %s58, %s59
    %p63 = pneg %p57
    %p64 = scmp.eq.s32.totalorder %s10, 1
    %p65 = por %p63, %p64
    %p66 = scmp.ne.s32.totalorder %s58, %s61
    %p67 = scmp.eq.s32.totalorder %s10, 0
    %p68 = por %p66, %p67
    %p69 = scmp.ne.s32.totalorder %s58, %s61
    %p70 = scmp.eq.s32.totalorder %s15, 1
    %p71 = por %p69, %p70
    %p72 = scmp.ne.s32.totalorder %s61, %s62
    %p73 = scmp.eq.s32.totalorder %s15, 0
    %p74 = por %p72, %p73
    %p75 = scmp.ne.s32.totalorder %s61, %s62
    %p76 = scmp.eq.s32.totalorder %s16, 1
    %p77 = por %p75, %p76
    %p79 = scmp.ne.s32.totalorder %s62, %s78
    %p80 = scmp.eq.s32.totalorder %s16, 0
    %p81 = por %p79, %p80
    %s82 = ssub.s32 %s18, %s25
    %p83 = scmp.eq.s32.totalorder %s82, 0
    %s85 = sadd.s32 %s84, 1
    %s86 = scalar_select %p83, %s84, %s85
    %p89 = pneg %p83
    %p90 = scmp.eq.s32.totalorder %s10, 1
    %p91 = por %p89, %p90
    %p92 = scmp.ne.s32.totalorder %s84, %s87
    %p93 = scmp.eq.s32.totalorder %s10, 0
    %p94 = por %p92, %p93
    %p95 = scmp.ne.s32.totalorder %s84, %s87
    %p96 = scmp.eq.s32.totalorder %s15, 1
    %p97 = por %p95, %p96
    %p98 = scmp.ne.s32.totalorder %s87, %s88
    %p99 = scmp.eq.s32.totalorder %s15, 0
    %p100 = por %p98, %p99
    %p101 = scmp.ne.s32.totalorder %s87, %s88
    %p102 = scmp.eq.s32.totalorder %s16, 1
    %p103 = por %p101, %p102
    %p105 = scmp.ne.s32.totalorder %s88, %s104
    %p106 = scmp.eq.s32.totalorder %s16, 0
    %p107 = por %p105, %p106
    %s108 = ssub.s32 %s17, %s29
    %s109 = ssub.s32 %s18, %s25
    %s110 = sor.u32 %s108, %s109
    %p111 = scmp.eq.s32.totalorder %s110, 0
    %s113 = sadd.s32 %s112, 1
    %s114 = scalar_select %p111, %s112, %s113
    %p117 = pneg %p111
    %p118 = scmp.eq.s32.totalorder %s10, 1
    %p119 = por %p117, %p118
    %p120 = scmp.ne.s32.totalorder %s112, %s115
    %p121 = scmp.eq.s32.totalorder %s10, 0
    %p122 = por %p120, %p121
    %p123 = scmp.ne.s32.totalorder %s112, %s115
    %p124 = scmp.eq.s32.totalorder %s15, 1
    %p125 = por %p123, %p124
    %p126 = scmp.ne.s32.totalorder %s115, %s116
    %p127 = scmp.eq.s32.totalorder %s15, 0
    %p128 = por %p126, %p127
    %p129 = scmp.ne.s32.totalorder %s115, %s116
    %p130 = scmp.eq.s32.totalorder %s16, 1
    %p131 = por %p129, %p130
    %p133 = scmp.ne.s32.totalorder %s116, %s132
    %p134 = scmp.eq.s32.totalorder %s16, 0
    %p135 = por %p133, %p134
    %s136 = ssub.s32 %s17, %s29
    %s137 = ssub.s32 %s18, %s25
    %s138 = sor.u32 %s136, %s137
    %p139 = scmp.eq.s32.totalorder %s138, 0
    %s141 = sadd.s32 %s140, 1
    %s142 = scalar_select %p139, %s140, %s141
    %p145 = pneg %p139
    %p146 = scmp.eq.s32.totalorder %s10, 1
    %p147 = por %p145, %p146
    %p148 = scmp.ne.s32.totalorder %s140, %s143
    %p149 = scmp.eq.s32.totalorder %s10, 0
    %p150 = por %p148, %p149
    %p151 = scmp.ne.s32.totalorder %s140, %s143
    %p152 = scmp.eq.s32.totalorder %s15, 1
    %p153 = por %p151, %p152
    %p154 = scmp.ne.s32.totalorder %s143, %s144
    %p155 = scmp.eq.s32.totalorder %s15, 0
    %p156 = por %p154, %p155
    %p157 = scmp.ne.s32.totalorder %s143, %s144
    %p158 = scmp.eq.s32.totalorder %s16, 1
    %p159 = por %p157, %p158
    %p161 = scmp.ne.s32.totalorder %s144, %s160
    %p162 = scmp.eq.s32.totalorder %s16, 0
    %p163 = por %p161, %p162
    %p164 = scmp.le.s32.totalorder 1, %s10
    %p165 = scmp.lt.s32.totalorder %s10, 3
    %p166 = pnand %p164, %p165
    %p167 = pneg %p166
    // Predicated region
    $region9: #{basic_block_enc.3} parent=5 // pred_check
      _
    $region10: #{basic_block_enc.3} parent=5 // pred_check_branch
      %169 = sbr.rel (%p166) target = $region12
    $region11: #{basic_block_enc.3} parent=5 // pred_region
      %s170 = ssub.s32 %s10, 1
      // Predicated region
      $region13: #{basic_block_enc.3} parent=11 // pred_check
        %p171 = pneg %p74
      $region14: #{basic_block_enc.3} parent=11 // pred_check_branch
        %173 = sbr.rel (%p171) target = $region16
      $region15: #{basic_block_enc.3} parent=11 // pred_region
        %p174 = scmp.lt.s32.totalorder %s20, 0
        %s175 = scalar_select %p174, %s20, 0
        %s176 = smul.addr %s175, 4
        %s177 = scalar_lea.vmem %s1, %s176
      $region16: #{basic_block_enc.3} parent=11 // pred_fallthru
        _
      // Predicated region
      $region17: #{basic_block_enc.3} parent=11 // pred_check
        %p178 = pneg %p100
      $region18: #{basic_block_enc.3} parent=11 // pred_check_branch
        %180 = sbr.rel (%p178) target = $region20
      $region19: #{basic_block_enc.3} parent=11 // pred_region
        %p181 = scmp.lt.s32.totalorder %s20, 0
        %s182 = scalar_select %p181, %s20, 0
        %s183 = scalar_lea.vmem %s2, %s182
      $region20: #{basic_block_enc.3} parent=11 // pred_fallthru
        _
    $region12: #{basic_block_enc.3} parent=5 // pred_fallthru
      _
    %p184 = scmp.lt.s32.totalorder %s10, 2
    // Predicated region
    $region21: #{basic_block_enc.3} parent=5 // pred_check
      %p185 = pneg %p184
    $region22: #{basic_block_enc.3} parent=5 // pred_check_branch
      %187 = sbr.rel (%p185) target = $region24
    $region23: #{basic_block_enc.3} parent=5 // pred_region
      // Predicated region
      $region25: #{basic_block_enc.3} parent=23 // pred_check
        %p188 = pneg %p42
      $region26: #{basic_block_enc.3} parent=23 // pred_check_branch
        %190 = sbr.rel (%p188) target = $region28
      $region27: #{basic_block_enc.3} parent=23 // pred_region
        %s191 = smul.u32 32, %s17
        %p192 = scmp.lt.s32.totalorder %s191, 63
        %s193 = scalar_select %p192, %s191, 63
        %s194 = smul.addr %s193, 4
        %s195 = scalar_lea.vmem %s0, %s194
        %s196 = smul.u32 32, %s17
      $region28: #{basic_block_enc.3} parent=23 // pred_fallthru
        _
      // Predicated region
      $region29: #{basic_block_enc.3} parent=23 // pred_check
        %p197 = pneg %p122
      $region30: #{basic_block_enc.3} parent=23 // pred_check_branch
        %199 = sbr.rel (%p197) target = $region32
      $region31: #{basic_block_enc.3} parent=23 // pred_region
        %s200 = smul.u32 32, %s17
        %p201 = scmp.lt.s32.totalorder %s200, 63
        %s202 = scalar_select %p201, %s200, 63
        %p203 = scmp.lt.s32.totalorder %s18, 0
        %s204 = scalar_select %p203, %s18, 0
        %s205 = sadd.s32 %s204, %s202
        %s206 = smul.addr %s205, 4
        %s207 = scalar_lea.vmem %s3, %s206
        %s208 = smul.u32 32, %s17
      $region32: #{basic_block_enc.3} parent=23 // pred_fallthru
        _
    $region24: #{basic_block_enc.3} parent=5 // pred_fallthru
      _
    %p209 = scmp.le.s32.totalorder 1, %s10
    %p210 = scmp.lt.s32.totalorder %s10, 3
    %p211 = pnand %p209, %p210
    %p212 = pneg %p211
    // Predicated region
    $region33: #{basic_block_enc.3} parent=5 // pred_check
      _
    $region34: #{basic_block_enc.3} parent=5 // pred_check_branch
      %214 = sbr.rel (%p211) target = $region36
    $region35: #{basic_block_enc.3} parent=5 // pred_region
      %s215 = ssub.s32 %s10, 1
      %s216 = smul.u32 32, %s19
      %p217 = scmp.lt.s32.totalorder %s216, 63
      %s218 = scalar_select %p217, %s216, 63
      %s219 = smul.addr %s218, 4
      %s220 = scalar_lea.vmem %s0, %s219
      %p221 = pneg %p48
      %p222 = pneg %p45
      %p223 = scmp.lt.s32.totalorder %s20, 0
      %s224 = scalar_select %p223, %s20, 0
      %s225 = smul.addr %s224, 4
      %s226 = scalar_lea.vmem %s1, %s225
      %p227 = pneg %p74
      %p228 = pneg %p71
      %p229 = scmp.lt.s32.totalorder %s20, 0
      %s230 = scalar_select %p229, %s20, 0
      %s231 = scalar_lea.vmem %s2, %s230
      %p232 = pneg %p100
      %p233 = pneg %p97
      %s234 = smul.u32 32, %s19
      %p235 = scmp.lt.s32.totalorder %s234, 63
      %s236 = scalar_select %p235, %s234, 63
      %p237 = scmp.lt.s32.totalorder %s20, 0
      %s238 = scalar_select %p237, %s20, 0
      %s239 = sadd.s32 %s238, %s236
      %s240 = smul.addr %s239, 4
      %s241 = scalar_lea.vmem %s3, %s240
      %p242 = pneg %p128
      %p243 = pneg %p125
      %p244 = pneg %p156
      %p245 = pneg %p153
      %s246 = smul.u32 32, %s19
      %p247 = scmp.lt.s32.totalorder %s246, 63
      %s248 = scalar_select %p247, %s246, 63
      %p249 = scmp.lt.s32.totalorder %s20, 0
      %s250 = scalar_select %p249, %s20, 0
      %s251 = sadd.s32 %s250, %s248
      %s252 = smul.addr %s251, 8
      %s253 = scalar_lea.vmem %s4, %s252
      %s254 = smul.u32 32, %s19
      %p255 = scmp.lt.s32.totalorder %s254, 63
      %s256 = scalar_select %p255, %s254, 63
      %s257 = smul.addr %s256, 4
      %s258 = scalar_lea.vmem %s0, %s257
      %s259 = smul.u32 32, %s19
      %p260 = scmp.lt.s32.totalorder %s20, 0
      %s261 = scalar_select %p260, %s20, 0
      %s262 = smul.addr %s261, 4
      %s263 = scalar_lea.vmem %s1, %s262
      %p264 = scmp.lt.s32.totalorder %s20, 0
      %s265 = scalar_select %p264, %s20, 0
      %s266 = scalar_lea.vmem %s2, %s265
      %s267 = smul.u32 32, %s19
      %p268 = scmp.lt.s32.totalorder %s267, 63
      %s269 = scalar_select %p268, %s267, 63
      %p270 = scmp.lt.s32.totalorder %s20, 0
      %s271 = scalar_select %p270, %s20, 0
      %s272 = sadd.s32 %s271, %s269
      %s273 = smul.addr %s272, 4
      %s274 = scalar_lea.vmem %s3, %s273
      %s275 = smul.u32 32, %s19
      %s276 = smul.u32 32, %s19
      %p277 = scmp.lt.s32.totalorder %s276, 63
      %s278 = scalar_select %p277, %s276, 63
      %p279 = scmp.lt.s32.totalorder %s20, 0
      %s280 = scalar_select %p279, %s20, 0
      %s281 = sadd.s32 %s280, %s278
      %s282 = smul.addr %s281, 8
      %s283 = scalar_lea.vmem %s4, %s282
      %s284 = smul.u32 32, %s19
      %v286 = vld [vmem:[%s258] sm:$0xf]
      %v287 = vld [vmem:[%s258 + $0x4] sm:$0xf]
      %v288 = vld [vmem:[%s258 + $0x8] sm:$0xf]
      %v289 = vld [vmem:[%s258 + $0xc] sm:$0xf]
      %v290 = vld [vmem:[%s258 + $0x10] sm:$0xf]
      %v291 = vld [vmem:[%s258 + $0x14] sm:$0xf]
      %v292 = vld [vmem:[%s258 + $0x18] sm:$0xf]
      %v293 = vld [vmem:[%s258 + $0x1c] sm:$0xf]
      %v294 = vld [vmem:[%s258 + $0x20] sm:$0xf]
      %v295 = vld [vmem:[%s258 + $0x24] sm:$0xf]
      %v296 = vld [vmem:[%s258 + $0x28] sm:$0xf]
      %v297 = vld [vmem:[%s258 + $0x2c] sm:$0xf]
      %v298 = vld [vmem:[%s258 + $0x30] sm:$0xf]
      %v299 = vld [vmem:[%s258 + $0x34] sm:$0xf]
      %v300 = vld [vmem:[%s258 + $0x38] sm:$0xf]
      %v301 = vld [vmem:[%s258 + $0x3c] sm:$0xf]
      %v302 = vld [vmem:[%s258 + $0x40] sm:$0xf]
      %v303 = vld [vmem:[%s258 + $0x44] sm:$0xf]
      %v304 = vld [vmem:[%s258 + $0x48] sm:$0xf]
      %v305 = vld [vmem:[%s258 + $0x4c] sm:$0xf]
      %v306 = vld [vmem:[%s258 + $0x50] sm:$0xf]
      %v307 = vld [vmem:[%s258 + $0x54] sm:$0xf]
      %v308 = vld [vmem:[%s258 + $0x58] sm:$0xf]
      %v309 = vld [vmem:[%s258 + $0x5c] sm:$0xf]
      %v310 = vld [vmem:[%s258 + $0x60] sm:$0xf]
      %v311 = vld [vmem:[%s258 + $0x64] sm:$0xf]
      %v312 = vld [vmem:[%s258 + $0x68] sm:$0xf]
      %v313 = vld [vmem:[%s258 + $0x6c] sm:$0xf]
      %v314 = vld [vmem:[%s258 + $0x70] sm:$0xf]
      %v315 = vld [vmem:[%s258 + $0x74] sm:$0xf]
      %v316 = vld [vmem:[%s258 + $0x78] sm:$0xf]
      %v317 = vld [vmem:[%s258 + $0x7c] sm:$0xf]
      %v318 = vld [vmem:[%s263] sm:$0xf]
      %v319 = vld [vmem:[%s263 + $0x4] sm:$0xf]
      %v320 = vld [vmem:[%s263 + $0x8] sm:$0xf]
      %v321 = vld [vmem:[%s263 + $0xc] sm:$0xf]
      %v322 = vld [vmem:[%s263 + $0x10] sm:$0x3]
      %v323 = vld [vmem:[%s266] sm:$0x1]
      %v325 = vlaneseq
      %v326 = vshrl.u32 %v325, 7
      %v327 = vsub.s32 0, %v326
      %v328 = vrot.slane %v323, %v327
      %v362 = vunpack.c.l.b16 %v286
      %v363 = vunpack.c.l.b16 %v287
      %v364 = vunpack.c.l.b16 %v288
      %v365 = vunpack.c.l.b16 %v289
      %v366 = vunpack.c.l.b16 %v290
      %v367 = vunpack.c.l.b16 %v291
      %v368 = vunpack.c.l.b16 %v292
      %v369 = vunpack.c.l.b16 %v293
      %v370 = vunpack.c.l.b16 %v294
      %v371 = vunpack.c.l.b16 %v295
      %v372 = vunpack.c.l.b16 %v296
      %v373 = vunpack.c.l.b16 %v297
      %v374 = vunpack.c.l.b16 %v298
      %v375 = vunpack.c.l.b16 %v299
      %v376 = vunpack.c.l.b16 %v300
      %v377 = vunpack.c.l.b16 %v301
      %v378 = vunpack.c.l.b16 %v302
      %v379 = vunpack.c.l.b16 %v303
      %v380 = vunpack.c.l.b16 %v304
      %v381 = vunpack.c.l.b16 %v305
      %v382 = vunpack.c.l.b16 %v306
      %v383 = vunpack.c.l.b16 %v307
      %v384 = vunpack.c.l.b16 %v308
      %v385 = vunpack.c.l.b16 %v309
      %v386 = vunpack.c.l.b16 %v310
      %v387 = vunpack.c.l.b16 %v311
      %v388 = vunpack.c.l.b16 %v312
      %v389 = vunpack.c.l.b16 %v313
      %v390 = vunpack.c.l.b16 %v314
      %v391 = vunpack.c.l.b16 %v315
      %v392 = vunpack.c.l.b16 %v316
      %v393 = vunpack.c.l.b16 %v317
      %v394 = vpack.c.b16 %v363, %v362
      %v395 = vpack.c.b16 %v365, %v364
      %v396 = vpack.c.b16 %v367, %v366
      %v397 = vpack.c.b16 %v369, %v368
      %v398 = vpack.c.b16 %v371, %v370
      %v399 = vpack.c.b16 %v373, %v372
      %v400 = vpack.c.b16 %v375, %v374
      %v401 = vpack.c.b16 %v377, %v376
      %v402 = vpack.c.b16 %v379, %v378
      %v403 = vpack.c.b16 %v381, %v380
      %v404 = vpack.c.b16 %v383, %v382
      %v405 = vpack.c.b16 %v385, %v384
      %v406 = vpack.c.b16 %v387, %v386
      %v407 = vpack.c.b16 %v389, %v388
      %v408 = vpack.c.b16 %v391, %v390
      %v409 = vpack.c.b16 %v393, %v392
      %v415 = vunpack.c.l.b16 %v318
      %v416 = vunpack.c.l.b16 %v319
      %v417 = vunpack.c.l.b16 %v320
      %v418 = vunpack.c.l.b16 %v321
      %v419 = vunpack.c.l.b16 %v322
      %v420 = vpack.c.b16 %v416, %v415
      %v421 = vpack.c.b16 %v418, %v417
      %v422 = vpack.c.b16 %v419, %v419
      %vm425 = vcmask 293888
      %v427 = vsel %vm425, %v394, 0
      %v430 = vsel %vm425, %v395, 0
      %v433 = vsel %vm425, %v396, 0
      %v436 = vsel %vm425, %v397, 0
      %v439 = vsel %vm425, %v398, 0
      %v442 = vsel %vm425, %v399, 0
      %v445 = vsel %vm425, %v400, 0
      %v448 = vsel %vm425, %v401, 0
      %v451 = vsel %vm425, %v402, 0
      %v454 = vsel %vm425, %v403, 0
      %v457 = vsel %vm425, %v404, 0
      %v460 = vsel %vm425, %v405, 0
      %v463 = vsel %vm425, %v406, 0
      %v466 = vsel %vm425, %v407, 0
      %v469 = vsel %vm425, %v408, 0
      %v472 = vsel %vm425, %v409, 0
      %vm474 = vcmask 1041408
      %v476 = vsel %vm474, %v422, 0
      %478 = vmatprep.subr.bf16.mxu0 0
      %479 = vmatpush1.bf16.msra.mxu0 %v420
      %480 = vmatprep.subr.bf16.mxu0 0
      %481 = vmatpush1.bf16.msra.mxu0 %v421
      %482 = vmatprep.subr.bf16.mxu0 0
      %483 = vmatpush1.bf16.msra.mxu0 %v476
      %484 = vmatprep.subr.bf16.mxu0 0
      %485 = vmatpush1.bf16.msra.mxu0 0
      %486 = vmatprep.subr.bf16.mxu0 0
      %487 = vmatpush1.bf16.msra.mxu0 0
      %488 = vmatprep.subr.bf16.mxu0 0
      %489 = vmatpush1.bf16.msra.mxu0 0
      %490 = vmatprep.subr.bf16.mxu0 0
      %491 = vmatpush1.bf16.msra.mxu0 0
      %492 = vmatprep.subr.bf16.mxu0 0
      %493 = vmatpush1.bf16.msra.mxu0 0
      %494 = vmatprep.subr.bf16.mxu0 0
      %495 = vmatpush1.bf16.msra.mxu0 0
      %496 = vmatprep.subr.bf16.mxu0 0
      %497 = vmatpush1.bf16.msra.mxu0 0
      %498 = vmatprep.subr.bf16.mxu0 0
      %499 = vmatpush1.bf16.msra.mxu0 0
      %500 = vmatprep.subr.bf16.mxu0 0
      %501 = vmatpush1.bf16.msra.mxu0 0
      %502 = vmatprep.subr.bf16.mxu0 0
      %503 = vmatpush1.bf16.msra.mxu0 0
      %504 = vmatprep.subr.bf16.mxu0 0
      %505 = vmatpush1.bf16.msra.mxu0 0
      %506 = vmatprep.subr.bf16.mxu0 0
      %507 = vmatpush1.bf16.msra.mxu0 0
      %508 = vmatprep.subr.bf16.mxu0 0
      %509 = vmatpush1.bf16.msra.mxu0 0
      %510 = vmatprep.mubr.bf16.mxu0 0
      %511 = vmatmul.mubr.bf16.gmra.mrb[0].mxu0 %v427
      %v512 = vpop.f32.mrb[0].mxu0
      %v513 = vadd.f32 %v328, %v512
      %v514 = vpop.f32.mrb[0].mxu0
      %v515 = vpop.f32.mrb[0].mxu0
      %v516 = vadd.f32 %v328, %v515
      %v517 = vpop.f32.mrb[0].mxu0
      %518 = vmatprep.mubr.bf16.mxu0 0
      %519 = vmatmul.mubr.bf16.gmra.mrb[0].mxu0 %v430
      %v520 = vpop.f32.mrb[0].mxu0
      %v521 = vadd.f32 %v328, %v520
      %v522 = vpop.f32.mrb[0].mxu0
      %v523 = vpop.f32.mrb[0].mxu0
      %v524 = vadd.f32 %v328, %v523
      %v525 = vpop.f32.mrb[0].mxu0
      %526 = vmatprep.mubr.bf16.mxu0 0
      %527 = vmatmul.mubr.bf16.gmra.mrb[0].mxu0 %v433
      %v528 = vpop.f32.mrb[0].mxu0
      %v529 = vadd.f32 %v328, %v528
      %v530 = vpop.f32.mrb[0].mxu0
      %v531 = vpop.f32.mrb[0].mxu0
      %v532 = vadd.f32 %v328, %v531
      %v533 = vpop.f32.mrb[0].mxu0
      %534 = vmatprep.mubr.bf16.mxu0 0
      %535 = vmatmul.mubr.bf16.gmra.mrb[0].mxu0 %v436
      %v536 = vpop.f32.mrb[0].mxu0
      %v537 = vadd.f32 %v328, %v536
      %v538 = vpop.f32.mrb[0].mxu0
      %v539 = vpop.f32.mrb[0].mxu0
      %v540 = vadd.f32 %v328, %v539
      %v541 = vpop.f32.mrb[0].mxu0
      %542 = vmatprep.mubr.bf16.mxu0 0
      %543 = vmatmul.mubr.bf16.gmra.mrb[0].mxu0 %v439
      %v544 = vpop.f32.mrb[0].mxu0
      %v545 = vadd.f32 %v328, %v544
      %v546 = vpop.f32.mrb[0].mxu0
      %v547 = vpop.f32.mrb[0].mxu0
      %v548 = vadd.f32 %v328, %v547
      %v549 = vpop.f32.mrb[0].mxu0
      %550 = vmatprep.mubr.bf16.mxu0 0
      %551 = vmatmul.mubr.bf16.gmra.mrb[0].mxu0 %v442
      %v552 = vpop.f32.mrb[0].mxu0
      %v553 = vadd.f32 %v328, %v552
      %v554 = vpop.f32.mrb[0].mxu0
      %v555 = vpop.f32.mrb[0].mxu0
      %v556 = vadd.f32 %v328, %v555
      %v557 = vpop.f32.mrb[0].mxu0
      %558 = vmatprep.mubr.bf16.mxu0 0
      %559 = vmatmul.mubr.bf16.gmra.mrb[0].mxu0 %v445
      %v560 = vpop.f32.mrb[0].mxu0
      %v561 = vadd.f32 %v328, %v560
      %v562 = vpop.f32.mrb[0].mxu0
      %v563 = vpop.f32.mrb[0].mxu0
      %v564 = vadd.f32 %v328, %v563
      %v565 = vpop.f32.mrb[0].mxu0
      %566 = vmatprep.mubr.bf16.mxu0 0
      %567 = vmatmul.mubr.bf16.gmra.mrb[0].mxu0 %v448
      %v568 = vpop.f32.mrb[0].mxu0
      %v569 = vadd.f32 %v328, %v568
      %v570 = vpop.f32.mrb[0].mxu0
      %v571 = vpop.f32.mrb[0].mxu0
      %v572 = vadd.f32 %v328, %v571
      %v573 = vpop.f32.mrb[0].mxu0
      %574 = vmatprep.mubr.bf16.mxu0 0
      %575 = vmatmul.mubr.bf16.gmra.mrb[0].mxu0 %v451
      %v576 = vpop.f32.mrb[0].mxu0
      %v577 = vadd.f32 %v328, %v576
      %v578 = vpop.f32.mrb[0].mxu0
      %v579 = vpop.f32.mrb[0].mxu0
      %v580 = vadd.f32 %v328, %v579
      %v581 = vpop.f32.mrb[0].mxu0
      %582 = vmatprep.mubr.bf16.mxu0 0
      %583 = vmatmul.mubr.bf16.gmra.mrb[0].mxu0 %v454
      %v584 = vpop.f32.mrb[0].mxu0
      %v585 = vadd.f32 %v328, %v584
      %v586 = vpop.f32.mrb[0].mxu0
      %v587 = vpop.f32.mrb[0].mxu0
      %v588 = vadd.f32 %v328, %v587
      %v589 = vpop.f32.mrb[0].mxu0
      %590 = vmatprep.mubr.bf16.mxu0 0
      %591 = vmatmul.mubr.bf16.gmra.mrb[0].mxu0 %v457
      %v592 = vpop.f32.mrb[0].mxu0
      %v593 = vadd.f32 %v328, %v592
      %v594 = vpop.f32.mrb[0].mxu0
      %v595 = vpop.f32.mrb[0].mxu0
      %v596 = vadd.f32 %v328, %v595
      %v597 = vpop.f32.mrb[0].mxu0
      %598 = vmatprep.mubr.bf16.mxu0 0
      %599 = vmatmul.mubr.bf16.gmra.mrb[0].mxu0 %v460
      %v600 = vpop.f32.mrb[0].mxu0
      %v601 = vadd.f32 %v328, %v600
      %v602 = vpop.f32.mrb[0].mxu0
      %v603 = vpop.f32.mrb[0].mxu0
      %v604 = vadd.f32 %v328, %v603
      %v605 = vpop.f32.mrb[0].mxu0
      %606 = vmatprep.mubr.bf16.mxu0 0
      %607 = vmatmul.mubr.bf16.gmra.mrb[0].mxu0 %v463
      %v608 = vpop.f32.mrb[0].mxu0
      %v609 = vadd.f32 %v328, %v608
      %v610 = vpop.f32.mrb[0].mxu0
      %v611 = vpop.f32.mrb[0].mxu0
      %v612 = vadd.f32 %v328, %v611
      %v613 = vpop.f32.mrb[0].mxu0
      %614 = vmatprep.mubr.bf16.mxu0 0
      %615 = vmatmul.mubr.bf16.gmra.mrb[0].mxu0 %v466
      %v616 = vpop.f32.mrb[0].mxu0
      %v617 = vadd.f32 %v328, %v616
      %v618 = vpop.f32.mrb[0].mxu0
      %v619 = vpop.f32.mrb[0].mxu0
      %v620 = vadd.f32 %v328, %v619
      %v621 = vpop.f32.mrb[0].mxu0
      %622 = vmatprep.mubr.bf16.mxu0 0
      %623 = vmatmul.mubr.bf16.gmra.mrb[0].mxu0 %v469
      %v624 = vpop.f32.mrb[0].mxu0
      %v625 = vadd.f32 %v328, %v624
      %v626 = vpop.f32.mrb[0].mxu0
      %v627 = vpop.f32.mrb[0].mxu0
      %v628 = vadd.f32 %v328, %v627
      %v629 = vpop.f32.mrb[0].mxu0
      %630 = vmatprep.mubr.bf16.mxu0 0
      %631 = vmatmul.mubr.bf16.gmra.mrb[0].mxu0 %v472
      %v632 = vpop.f32.mrb[0].mxu0
      %v633 = vadd.f32 %v328, %v632
      %v634 = vpop.f32.mrb[0].mxu0
      %v635 = vpop.f32.mrb[0].mxu0
      %v636 = vadd.f32 %v328, %v635
      %v637 = vpop.f32.mrb[0].mxu0
      %638 = vdwg.mxu0
      %v639 = vld [vmem:[%s274] sm:$0xf]
      %v640 = vld [vmem:[%s274 + $0x4] sm:$0xf]
      %v641 = vld [vmem:[%s274 + $0x8] sm:$0xf]
      %v642 = vld [vmem:[%s274 + $0xc] sm:$0xf]
      %v643 = vld [vmem:[%s274 + $0x10] sm:$0xf]
      %v644 = vld [vmem:[%s274 + $0x14] sm:$0xf]
      %v645 = vld [vmem:[%s274 + $0x18] sm:$0xf]
      %v646 = vld [vmem:[%s274 + $0x1c] sm:$0xf]
      %v647 = vld [vmem:[%s274 + $0x20] sm:$0xf]
      %v648 = vld [vmem:[%s274 + $0x24] sm:$0xf]
      %v649 = vld [vmem:[%s274 + $0x28] sm:$0xf]
      %v650 = vld [vmem:[%s274 + $0x2c] sm:$0xf]
      %v651 = vld [vmem:[%s274 + $0x30] sm:$0xf]
      %v652 = vld [vmem:[%s274 + $0x34] sm:$0xf]
      %v653 = vld [vmem:[%s274 + $0x38] sm:$0xf]
      %v654 = vld [vmem:[%s274 + $0x3c] sm:$0xf]
      %v655 = vld [vmem:[%s274 + $0x40] sm:$0xf]
      %v656 = vld [vmem:[%s274 + $0x44] sm:$0xf]
      %v657 = vld [vmem:[%s274 + $0x48] sm:$0xf]
      %v658 = vld [vmem:[%s274 + $0x4c] sm:$0xf]
      %v659 = vld [vmem:[%s274 + $0x50] sm:$0xf]
      %v660 = vld [vmem:[%s274 + $0x54] sm:$0xf]
      %v661 = vld [vmem:[%s274 + $0x58] sm:$0xf]
      %v662 = vld [vmem:[%s274 + $0x5c] sm:$0xf]
      %v663 = vld [vmem:[%s274 + $0x60] sm:$0xf]
      %v664 = vld [vmem:[%s274 + $0x64] sm:$0xf]
      %v665 = vld [vmem:[%s274 + $0x68] sm:$0xf]
      %v666 = vld [vmem:[%s274 + $0x6c] sm:$0xf]
      %v667 = vld [vmem:[%s274 + $0x70] sm:$0xf]
      %v668 = vld [vmem:[%s274 + $0x74] sm:$0xf]
      %v669 = vld [vmem:[%s274 + $0x78] sm:$0xf]
      %v670 = vld [vmem:[%s274 + $0x7c] sm:$0xf]
      %v671 = vunpack.c.l.bf16 %v639
      %v672 = vunpack.c.l.bf16 %v640
      %v673 = vunpack.c.l.bf16 %v641
      %v674 = vunpack.c.l.bf16 %v642
      %v675 = vunpack.c.l.bf16 %v643
      %v676 = vunpack.c.l.bf16 %v644
      %v677 = vunpack.c.l.bf16 %v645
      %v678 = vunpack.c.l.bf16 %v646
      %v679 = vunpack.c.l.bf16 %v647
      %v680 = vunpack.c.l.bf16 %v648
      %v681 = vunpack.c.l.bf16 %v649
      %v682 = vunpack.c.l.bf16 %v650
      %v683 = vunpack.c.l.bf16 %v651
      %v684 = vunpack.c.l.bf16 %v652
      %v685 = vunpack.c.l.bf16 %v653
      %v686 = vunpack.c.l.bf16 %v654
      %v687 = vunpack.c.l.bf16 %v655
      %v688 = vunpack.c.l.bf16 %v656
      %v689 = vunpack.c.l.bf16 %v657
      %v690 = vunpack.c.l.bf16 %v658
      %v691 = vunpack.c.l.bf16 %v659
      %v692 = vunpack.c.l.bf16 %v660
      %v693 = vunpack.c.l.bf16 %v661
      %v694 = vunpack.c.l.bf16 %v662
      %v695 = vunpack.c.l.bf16 %v663
      %v696 = vunpack.c.l.bf16 %v664
      %v697 = vunpack.c.l.bf16 %v665
      %v698 = vunpack.c.l.bf16 %v666
      %v699 = vunpack.c.l.bf16 %v667
      %v700 = vunpack.c.l.bf16 %v668
      %v701 = vunpack.c.l.bf16 %v669
      %v702 = vunpack.c.l.bf16 %v670
      %v703 = vadd.f32 %v513, %v671
      %v704 = vadd.f32 %v516, %v672
      %v705 = vadd.f32 %v521, %v673
      %v706 = vadd.f32 %v524, %v674
      %v707 = vadd.f32 %v529, %v675
      %v708 = vadd.f32 %v532, %v676
      %v709 = vadd.f32 %v537, %v677
      %v710 = vadd.f32 %v540, %v678
      %v711 = vadd.f32 %v545, %v679
      %v712 = vadd.f32 %v548, %v680
      %v713 = vadd.f32 %v553, %v681
      %v714 = vadd.f32 %v556, %v682
      %v715 = vadd.f32 %v561, %v683
      %v716 = vadd.f32 %v564, %v684
      %v717 = vadd.f32 %v569, %v685
      %v718 = vadd.f32 %v572, %v686
      %v719 = vadd.f32 %v577, %v687
      %v720 = vadd.f32 %v580, %v688
      %v721 = vadd.f32 %v585, %v689
      %v722 = vadd.f32 %v588, %v690
      %v723 = vadd.f32 %v593, %v691
      %v724 = vadd.f32 %v596, %v692
      %v725 = vadd.f32 %v601, %v693
      %v726 = vadd.f32 %v604, %v694
      %v727 = vadd.f32 %v609, %v695
      %v728 = vadd.f32 %v612, %v696
      %v729 = vadd.f32 %v617, %v697
      %v730 = vadd.f32 %v620, %v698
      %v731 = vadd.f32 %v625, %v699
      %v732 = vadd.f32 %v628, %v700
      %v733 = vadd.f32 %v633, %v701
      %v734 = vadd.f32 %v636, %v702
      %v735 = vmax.f32 %v703, 0.0
      %v736 = vmax.f32 %v704, 0.0
      %v737 = vmax.f32 %v705, 0.0
      %v738 = vmax.f32 %v706, 0.0
      %v739 = vmax.f32 %v707, 0.0
      %v740 = vmax.f32 %v708, 0.0
      %v741 = vmax.f32 %v709, 0.0
      %v742 = vmax.f32 %v710, 0.0
      %v743 = vmax.f32 %v711, 0.0
      %v744 = vmax.f32 %v712, 0.0
      %v745 = vmax.f32 %v713, 0.0
      %v746 = vmax.f32 %v714, 0.0
      %v747 = vmax.f32 %v715, 0.0
      %v748 = vmax.f32 %v716, 0.0
      %v749 = vmax.f32 %v717, 0.0
      %v750 = vmax.f32 %v718, 0.0
      %v751 = vmax.f32 %v719, 0.0
      %v752 = vmax.f32 %v720, 0.0
      %v753 = vmax.f32 %v721, 0.0
      %v754 = vmax.f32 %v722, 0.0
      %v755 = vmax.f32 %v723, 0.0
      %v756 = vmax.f32 %v724, 0.0
      %v757 = vmax.f32 %v725, 0.0
      %v758 = vmax.f32 %v726, 0.0
      %v759 = vmax.f32 %v727, 0.0
      %v760 = vmax.f32 %v728, 0.0
      %v761 = vmax.f32 %v729, 0.0
      %v762 = vmax.f32 %v730, 0.0
      %v763 = vmax.f32 %v731, 0.0
      %v764 = vmax.f32 %v732, 0.0
      %v765 = vmax.f32 %v733, 0.0
      %v766 = vmax.f32 %v734, 0.0
      %767 = vst [vmem:[%s283] sm:$0xff] %v735
      %768 = vst [vmem:[%s283 + $0x8] sm:$0xff] %v736
      %769 = vst [vmem:[%s283 + $0x10] sm:$0xff] %v737
      %770 = vst [vmem:[%s283 + $0x18] sm:$0xff] %v738
      %771 = vst [vmem:[%s283 + $0x20] sm:$0xff] %v739
      %772 = vst [vmem:[%s283 + $0x28] sm:$0xff] %v740
      %773 = vst [vmem:[%s283 + $0x30] sm:$0xff] %v741
      %774 = vst [vmem:[%s283 + $0x38] sm:$0xff] %v742
      %775 = vst [vmem:[%s283 + $0x40] sm:$0xff] %v743
      %776 = vst [vmem:[%s283 + $0x48] sm:$0xff] %v744
      %777 = vst [vmem:[%s283 + $0x50] sm:$0xff] %v745
      %778 = vst [vmem:[%s283 + $0x58] sm:$0xff] %v746
      %779 = vst [vmem:[%s283 + $0x60] sm:$0xff] %v747
      %780 = vst [vmem:[%s283 + $0x68] sm:$0xff] %v748
      %781 = vst [vmem:[%s283 + $0x70] sm:$0xff] %v749
      %782 = vst [vmem:[%s283 + $0x78] sm:$0xff] %v750
      %783 = vst [vmem:[%s283 + $0x80] sm:$0xff] %v751
      %784 = vst [vmem:[%s283 + $0x88] sm:$0xff] %v752
      %785 = vst [vmem:[%s283 + $0x90] sm:$0xff] %v753
      %786 = vst [vmem:[%s283 + $0x98] sm:$0xff] %v754
      %787 = vst [vmem:[%s283 + $0xa0] sm:$0xff] %v755
      %788 = vst [vmem:[%s283 + $0xa8] sm:$0xff] %v756
      %789 = vst [vmem:[%s283 + $0xb0] sm:$0xff] %v757
      %790 = vst [vmem:[%s283 + $0xb8] sm:$0xff] %v758
      %791 = vst [vmem:[%s283 + $0xc0] sm:$0xff] %v759
      %792 = vst [vmem:[%s283 + $0xc8] sm:$0xff] %v760
      %793 = vst [vmem:[%s283 + $0xd0] sm:$0xff] %v761
      %794 = vst [vmem:[%s283 + $0xd8] sm:$0xff] %v762
      %795 = vst [vmem:[%s283 + $0xe0] sm:$0xff] %v763
      %796 = vst [vmem:[%s283 + $0xe8] sm:$0xff] %v764
      %797 = vst [vmem:[%s283 + $0xf0] sm:$0xff] %v765
      %798 = vst [vmem:[%s283 + $0xf8] sm:$0xff] %v766
      %s799 = smul.u32 32, %s19
      %p800 = scmp.lt.s32.totalorder %s799, 63
      %s801 = scalar_select %p800, %s799, 63
      %p802 = scmp.lt.s32.totalorder %s20, 0
      %s803 = scalar_select %p802, %s20, 0
      %s804 = sadd.s32 %s803, %s801
      %s805 = smul.addr %s804, 8
      %s806 = scalar_lea.vmem %s4, %s805
      // Predicated region
      $region37: #{basic_block_enc.3} parent=35 // pred_check
        %p807 = pneg %p153
      $region38: #{basic_block_enc.3} parent=35 // pred_check_branch
        %809 = sbr.rel (%p807) target = $region40
      $region39: #{basic_block_enc.3} parent=35 // pred_region
        %s810 = smul.u32 32, %s19
      $region40: #{basic_block_enc.3} parent=35 // pred_fallthru
        _
    $region36: #{basic_block_enc.3} parent=5 // pred_fallthru
      _
    %p811 = scmp.le.s32.totalorder 2, %s10
    // Predicated region
    $region41: #{basic_block_enc.3} parent=5 // pred_check
      %p812 = pneg %p811
    $region42: #{basic_block_enc.3} parent=5 // pred_check_branch
      %814 = sbr.rel (%p812) target = $region44
    $region43: #{basic_block_enc.3} parent=5 // pred_region
      %s815 = ssub.s32 %s10, 2
      // Predicated region
      $region45: #{basic_block_enc.3} parent=43 // pred_check
        %p816 = pneg %p159
      $region46: #{basic_block_enc.3} parent=43 // pred_check_branch
        %818 = sbr.rel (%p816) target = $region48
      $region47: #{basic_block_enc.3} parent=43 // pred_region
        %s819 = smul.u32 32, %s21
        %p820 = scmp.lt.s32.totalorder %s819, 63
        %s821 = scalar_select %p820, %s819, 63
        %p822 = scmp.lt.s32.totalorder %s22, 0
        %s823 = scalar_select %p822, %s22, 0
        %s824 = sadd.s32 %s823, %s821
        %s825 = smul.addr %s824, 8
        %s826 = scalar_lea.vmem %s4, %s825
      $region48: #{basic_block_enc.3} parent=43 // pred_fallthru
        _
    $region44: #{basic_block_enc.3} parent=5 // pred_fallthru
      _
  $region6: #{basic_block_enc.3} parent=0 // loop_footer
    %s14 = sadd.s32 1, %s10
  $region7: #{basic_block_enc.3} parent=0 // loop_footer_branch
    %9 = sbr.rel target = $region3
  $region8: #{basic_block_enc.3} parent=0 // loop_exit
    _

</llo_original>
